<compile_context>
chip_gen: v7x
topology: tpu7x:2x2x1
jax: 0.10.0
libtpu: 0.0.40
codegen_flags: <defaults>
</compile_context>

<pallas_src>
import numpy as np
import jax
import jax.numpy as jnp
from jax import lax
from jax.experimental import pallas as pl
from jax.experimental.pallas import tpu as pltpu

N_FFT = 512
HOP = 256
N_FREQ = N_FFT // 2 + 1                 # 257 one-sided bins
NCOL = 640                              # [cos 0..255 | sin 0..255 | Nyquist cos (pad to 128)]
AMIN = 1e-10                            # torchaudio AmplitudeToDB amin
DB_SQ = float((10.0 / np.log(10.0)) ** 2)   # (dB per ln)^2 — applied once at finalize


def _round_up(x, m):
    return -(-x // m) * m


# ----------------------------- basis / mask setup (host, tiny) -----------------------------
def _hann_periodic(n):
    i = np.arange(n)
    return 0.5 - 0.5 * np.cos(2.0 * np.pi * i / n)      # torch.hann_window(periodic=True)


def _split_basis():
    """Windowed real-DFT basis, split into the two HOP-halves used by the in-kernel framing.
    Column layout: [cos bins 0..255 | sin bins 0..255 | cos bin 256, zero-padded to 128]."""
    n = np.arange(N_FFT)[:, None].astype(np.float64)
    k = np.arange(256)[None, :].astype(np.float64)
    w = _hann_periodic(N_FFT)[:, None]
    ang = 2.0 * np.pi * n * k / N_FFT
    basis = np.zeros((N_FFT, NCOL), np.float64)
    basis[:, :256] = w * np.cos(ang)                               # real part, bins 0..255
    basis[:, 256:512] = -(w * np.sin(ang))                         # imag part (bin-0 col == 0)
    basis[:, 512] = w[:, 0] * np.cos(2.0 * np.pi * n[:, 0] * 256.0 / N_FFT)  # Nyquist real
    b_lo = jnp.asarray(basis[:HOP].astype(np.float32))             # rows 0..255
    b_hi = jnp.asarray(basis[HOP:].astype(np.float32))             # rows 256..511
    nymask = np.zeros((1, 128), np.float32)
    nymask[0, 0] = 1.0                                             # only lane 0 is a real bin
    return b_lo, b_hi, jnp.asarray(nymask)


def _chunk_tiles(x, NT, TF, Bp):
    """[B, S] -> (Bp, NT, TF+1, 256) f32.  Tile t holds hop-chunks [t*TF .. t*TF+TF] of the
    reflect-padded signal; frame j of tile t is [chunk j | chunk j+1].  Gather-free layout glue:
    reflect pad + reshape + strided slice + concat (only one duplicated chunk per TF frames)."""
    B, S = x.shape
    xp = jnp.pad(x.astype(jnp.float32), ((0, 0), (N_FFT // 2, N_FFT // 2)), mode="reflect")
    n_chunks = NT * TF + 1
    need = n_chunks * HOP
    Lp = xp.shape[1]
    xp = jnp.pad(xp, ((0, 0), (0, max(0, need - Lp))))[:, :need]
    ch = xp.reshape(B, n_chunks, HOP)
    main = ch[:, :NT * TF, :].reshape(B, NT, TF, HOP)
    extra = ch[:, TF::TF, :].reshape(B, NT, 1, HOP)                # boundary chunk of each tile
    tiles = jnp.concatenate([main, extra], axis=2)                 # (B, NT, TF+1, HOP)
    return jnp.pad(tiles, ((0, Bp - B), (0, 0), (0, 0), (0, 0)))


# ----------------------------- Pallas kernel (hot path) -----------------------------
def _mse_va_kernel(vad_ref, nymask_ref, chp_ref, cht_ref, blo_ref, bhi_ref,
                   o_ref, pp_ref, pt_ref, tt_ref):
    t = pl.program_id(1)
    BT, TF, _ = vad_ref.shape

    @pl.when(t == 0)
    def _init():
        pp_ref[...] = jnp.zeros_like(pp_ref)
        pt_ref[...] = jnp.zeros_like(pt_ref)
        tt_ref[...] = jnp.zeros_like(tt_ref)

    vad = vad_ref[...]                      # (BT, TF, 1)   VAD per frame
    nymask = nymask_ref[...]                # (1, 128)      lane 0 = Nyquist bin, rest padding
    blo = blo_ref[...]                      # (256, 640)    windowed DFT rows 0..255
    bhi = bhi_ref[...]                      # (256, 640)    windowed DFT rows 256..511

    def masked_log_spec(ch_ref):
        # In-kernel framing: frame j = [chunk j | chunk j+1]  ->  Y = C_lo @ B_lo + C_hi @ B_hi
        ch = ch_ref[...]                                          # (BT, TF+1, 256) f32
        lo = ch[:, :TF, :].reshape(BT * TF, HOP)
        hi = ch[:, 1:, :].reshape(BT * TF, HOP)
        y = (jnp.dot(lo, blo, preferred_element_type=jnp.float32)
             + jnp.dot(hi, bhi, preferred_element_type=jnp.float32))
        y = y.reshape(BT, TF, NCOL)
        re = y[..., :256]                                         # bins 0..255 real
        im = y[..., 256:512]                                      # bins 0..255 imag (bin 0 -> 0)
        ny = y[..., 512:]                                         # lane 0 = bin 256 real
        # ln-domain dB (the 10/ln10 factor is folded into the finalize scale)
        db_main = jnp.log(jnp.maximum(re * re + im * im, AMIN)) * vad
        db_ny = jnp.log(jnp.maximum(ny * ny, AMIN)) * (vad * nymask)
        return db_main, db_ny

    sp_m, sp_n = masked_log_spec(chp_ref)   # prediction spectrum (masked, ln-domain)
    st_m, st_n = masked_log_spec(cht_ref)   # target spectrum

    def rsum(a, b):                         # (BT,TF,256)+(BT,TF,128) -> (BT,1)
        return (jnp.sum(a, axis=(1, 2), keepdims=True)
                + jnp.sum(b, axis=(1, 2), keepdims=True)).reshape(BT, 1)

    pp_ref[...] += rsum(sp_m * sp_m, sp_n * sp_n)
    pt_ref[...] += rsum(sp_m * st_m, sp_n * st_n)
    tt_ref[...] += rsum(st_m * st_m, st_n * st_n)

    @pl.when(t == pl.num_programs(1) - 1)
    def _finalize():
        pp = pp_ref[...]
        pt = pt_ref[...]
        tt = tt_ref[...]
        # sum((st - alpha*sp)^2) == S_tt - S_pt^2 / S_pp ; clamp fp cancellation at 0,
        # guard padded / all-silent rows (S_pp == 0) against 0/0.
        res = jnp.maximum(tt - (pt * pt) / pp, 0.0) * DB_SQ
        res = jnp.where(pp > 0.0, res, 0.0)
        o_ref[...] = jnp.broadcast_to(res, (BT, 128))             # lane-dense output block


def mse_with_va_only(pred, target, target_vad):
    """pred, target: [B, samples]; target_vad: [B, n_frames] with n_frames = samples//256 + 1."""
    B, S = pred.shape
    nf = S // HOP + 1
    assert target_vad.shape == (B, nf), (target_vad.shape, (B, nf))

    blo, bhi, nymask = _split_basis()

    # Frame tiling: TF frames per grid step (multiple of 8, capped at 128 -> v7x VMEM safe).
    TF = min(128, _round_up(nf, 8))
    NT = -(-nf // TF)
    # Batch tiling: >= 2 parallel batch blocks whenever B >= 2 (megacore on v7x), capped at 8.
    BT = max(1, min(8, -(-B // 2)))
    Bp = _round_up(B, BT)
    NB = Bp // BT

    chp = _chunk_tiles(pred, NT, TF, Bp)      # (Bp, NT, TF+1, 256) f32, streamed once
    cht = _chunk_tiles(target, NT, TF, Bp)
    # Padded frames / padded batch rows carry vad = 0, so they contribute exactly 0 to the sums.
    vad = jnp.pad(target_vad.astype(jnp.float32),
                  ((0, Bp - B), (0, NT * TF - nf)))[:, :, None]   # (Bp, NT*TF, 1)

    out = pl.pallas_call(
        _mse_va_kernel,
        out_shape=jax.ShapeDtypeStruct((NB, BT, 128), jnp.float32),
        grid=(NB, NT),
        in_specs=[
            pl.BlockSpec((BT, TF, 1), lambda b, t: (b, t, 0)),                  # vad
            pl.BlockSpec((1, 128), lambda b, t: (0, 0)),                        # Nyquist lane mask
            pl.BlockSpec((BT, None, TF + 1, HOP), lambda b, t: (b, t, 0, 0)),   # pred chunks
            pl.BlockSpec((BT, None, TF + 1, HOP), lambda b, t: (b, t, 0, 0)),   # target chunks
            pl.BlockSpec((HOP, NCOL), lambda b, t: (0, 0)),                     # basis rows 0..255
            pl.BlockSpec((HOP, NCOL), lambda b, t: (0, 0)),                     # basis rows 256..511
        ],
        out_specs=pl.BlockSpec((None, BT, 128), lambda b, t: (b, 0, 0)),        # per batch block
        scratch_shapes=[pltpu.VMEM((BT, 1), jnp.float32)] * 3,                  # S_pp, S_pt, S_tt
        compiler_params=pltpu.CompilerParams(
            dimension_semantics=("parallel", "arbitrary"),   # batch parallel, frames reduce
            vmem_limit_bytes=48 * 1024 * 1024,               # fits v7x's 64 MiB VMEM
        ),
    )(vad, nymask, chp, cht, blo, bhi)
    return out[:, :, 0].reshape(Bp)[:B]


# ----------------------------- pure-JAX f32 reference for validation -----------------------------
def _reference(pred, target, target_vad):
    n = np.arange(N_FFT)[:, None].astype(np.float64)
    k = np.arange(N_FREQ)[None, :].astype(np.float64)
    ang = 2.0 * np.pi * n * k / N_FFT
    w = _hann_periodic(N_FFT)[:, None]
    cosb = jnp.asarray((w * np.cos(ang)).astype(np.float32))
    sinb = jnp.asarray((-(w * np.sin(ang))).astype(np.float32))

    B, S = pred.shape
    nf = S // HOP + 1

    def frames(x):
        xp = jnp.pad(x.astype(jnp.float32), ((0, 0), (N_FFT // 2, N_FFT // 2)), mode="reflect")
        idx = jnp.arange(nf)[:, None] * HOP + jnp.arange(N_FFT)[None, :]
        return xp[:, idx]                                          # (B, nf, 512)

    def db_spec(x):
        fr = frames(x)
        re = jnp.einsum("bnf,fk->bnk", fr, cosb, precision=lax.Precision.HIGHEST)
        im = jnp.einsum("bnf,fk->bnk", fr, sinb, precision=lax.Precision.HIGHEST)
        p = re * re + im * im
        return 10.0 * jnp.log10(jnp.maximum(p, AMIN))

    v = target_vad.astype(jnp.float32)[:, :, None]
    sp = db_spec(pred) * v
    st = db_spec(target) * v
    alpha = (jnp.sum(sp * st, axis=(1, 2), keepdims=True)
             / jnp.sum(sp * sp, axis=(1, 2), keepdims=True))
    return jnp.sum((st - alpha * sp) ** 2, axis=(1, 2))


if __name__ == "__main__":
    B = 2
    SAMPLES = 2048                         # n_frames = 2048 // 256 + 1 = 9
    NF = SAMPLES // HOP + 1

    key = jax.random.PRNGKey(0)
    k1, k2, k3 = jax.random.split(key, 3)
    pred = jax.random.normal(k1, (B, SAMPLES), dtype=jnp.float32)
    target = jax.random.normal(k2, (B, SAMPLES), dtype=jnp.float32)
    target_vad = jax.random.bernoulli(k3, p=0.7, shape=(B, NF)).astype(jnp.float32)
    # make sure at least one frame per batch is active (avoid 0/0 alpha, as would torch)
    target_vad = target_vad.at[:, 0].set(1.0)

    out = jax.block_until_ready(mse_with_va_only(pred, target, target_vad))
    ref = jax.block_until_ready(_reference(pred, target, target_vad))
    # f32 STFT end-to-end: typical error is ~1e-5 relative; the tolerance leaves headroom for
    # reduced-precision MXU passes plus the alpha-cancellation amplification (<~1%).
    np.testing.assert_allclose(np.asarray(out), np.asarray(ref), rtol=2e-2, atol=1.0)
    print("KERNEL_OK")
</pallas_src>

<mosaic_0001>
module attributes {stable_mosaic.version = 11 : i64} {
  func.func @_mse_va_kernel(%arg0: i32, %arg1: i32, %arg2: memref<1x16x1xf32, #tpu.memory_space<vmem>>, %arg3: memref<1x128xf32, #tpu.memory_space<vmem>>, %arg4: memref<1x1x17x256xf32, #tpu.memory_space<vmem>>, %arg5: memref<1x1x17x256xf32, #tpu.memory_space<vmem>>, %arg6: memref<256x640xf32, #tpu.memory_space<vmem>>, %arg7: memref<256x640xf32, #tpu.memory_space<vmem>>, %arg8: memref<1x1x128xf32, #tpu.memory_space<vmem>>, %arg9: memref<1x1xf32, #tpu.memory_space<vmem>>, %arg10: memref<1x1xf32, #tpu.memory_space<vmem>>, %arg11: memref<1x1xf32, #tpu.memory_space<vmem>>) attributes {dimension_semantics = [#tpu.dimension_semantics<parallel>, #tpu.dimension_semantics<arbitrary>], iteration_bounds = array<i64: 2, 1>, scalar_prefetch = 0 : i64, scratch_operands = 3 : i64, tpu.core_type = #tpu.core_type<tc>, window_params = [{transform_indices = @transform_0, window_bounds = array<i64: 1, 16, 1>}, {pipeline_mode = #tpu.pipeline_mode<synchronous>, transform_indices = @transform_1, window_bounds = array<i64: 1, 128>}, {transform_indices = @transform_2, window_bounds = array<i64: 1, 1, 17, 256>}, {transform_indices = @transform_3, window_bounds = array<i64: 1, 1, 17, 256>}, {pipeline_mode = #tpu.pipeline_mode<synchronous>, transform_indices = @transform_4, window_bounds = array<i64: 256, 640>}, {pipeline_mode = #tpu.pipeline_mode<synchronous>, transform_indices = @transform_5, window_bounds = array<i64: 256, 640>}, {transform_indices = @transform_6, window_bounds = array<i64: 1, 1, 128>}]} {
    %c0_i32 = arith.constant 0 : i32
    %0 = arith.cmpi eq, %arg1, %c0_i32 : i32
    %1 = arith.extui %0 : i1 to i32
    %c0_i32_0 = arith.constant 0 : i32
    %2 = arith.cmpi ne, %1, %c0_i32_0 : i32
    scf.if %2 {
      %cst_44 = arith.constant 0.000000e+00 : f32
      %103 = vector.broadcast %cst_44 : f32 to vector<1x1xf32>
      %c0_45 = arith.constant 0 : index
      %c0_46 = arith.constant 0 : index
      %104 = vector.load %arg9[%c0_45, %c0_46] : memref<1x1xf32, #tpu.memory_space<vmem>>, vector<1x1xf32>
      tpu.vector_store %arg9[%c0_45, %c0_46], %103 {strides = array<i32>} : memref<1x1xf32, #tpu.memory_space<vmem>>, vector<1x1xf32>,
      %cst_47 = arith.constant 0.000000e+00 : f32
      %105 = vector.broadcast %cst_47 : f32 to vector<1x1xf32>
      %c0_48 = arith.constant 0 : index
      %c0_49 = arith.constant 0 : index
      %106 = vector.load %arg10[%c0_48, %c0_49] : memref<1x1xf32, #tpu.memory_space<vmem>>, vector<1x1xf32>
      tpu.vector_store %arg10[%c0_48, %c0_49], %105 {strides = array<i32>} : memref<1x1xf32, #tpu.memory_space<vmem>>, vector<1x1xf32>,
      %cst_50 = arith.constant 0.000000e+00 : f32
      %107 = vector.broadcast %cst_50 : f32 to vector<1x1xf32>
      %c0_51 = arith.constant 0 : index
      %c0_52 = arith.constant 0 : index
      %108 = vector.load %arg11[%c0_51, %c0_52] : memref<1x1xf32, #tpu.memory_space<vmem>>, vector<1x1xf32>
      tpu.vector_store %arg11[%c0_51, %c0_52], %107 {strides = array<i32>} : memref<1x1xf32, #tpu.memory_space<vmem>>, vector<1x1xf32>,
    } else {
    }
    %c0 = arith.constant 0 : index
    %c0_1 = arith.constant 0 : index
    %c0_2 = arith.constant 0 : index
    %3 = vector.load %arg2[%c0, %c0_1, %c0_2] : memref<1x16x1xf32, #tpu.memory_space<vmem>>, vector<1x16x1xf32>
    %c0_3 = arith.constant 0 : index
    %c0_4 = arith.constant 0 : index
    %4 = vector.load %arg3[%c0_3, %c0_4] : memref<1x128xf32, #tpu.memory_space<vmem>>, vector<1x128xf32>
    %c0_5 = arith.constant 0 : index
    %c0_6 = arith.constant 0 : index
    %5 = vector.load %arg6[%c0_5, %c0_6] : memref<256x640xf32, #tpu.memory_space<vmem>>, vector<256x640xf32>
    %c0_7 = arith.constant 0 : index
    %c0_8 = arith.constant 0 : index
    %6 = vector.load %arg7[%c0_7, %c0_8] : memref<256x640xf32, #tpu.memory_space<vmem>>, vector<256x640xf32>
    %c0_9 = arith.constant 0 : index
    %c0_10 = arith.constant 0 : index
    %c0_11 = arith.constant 0 : index
    %c0_12 = arith.constant 0 : index
    %7 = vector.load %arg4[%c0_9, %c0_10, %c0_11, %c0_12] : memref<1x1x17x256xf32, #tpu.memory_space<vmem>>, vector<1x1x17x256xf32>
    %8 = vector.shape_cast %7 : vector<1x1x17x256xf32> to vector<1x17x256xf32>
    %9 = vector.extract_strided_slice %8 {offsets = [0, 0, 0], sizes = [1, 16, 256], strides = [1, 1, 1]} : vector<1x17x256xf32> to vector<1x16x256xf32>
    %10 = vector.shape_cast %9 : vector<1x16x256xf32> to vector<16x256xf32>
    %11 = vector.extract_strided_slice %8 {offsets = [0, 1, 0], sizes = [1, 16, 256], strides = [1, 1, 1]} : vector<1x17x256xf32> to vector<1x16x256xf32>
    %12 = vector.shape_cast %11 : vector<1x16x256xf32> to vector<16x256xf32>
    %cst = arith.constant dense<0.000000e+00> : vector<16x640xf32>
    %13 = tpu.matmul %10, %5, %cst {dimension_numbers = #tpu.dot_dimension_numbers<[1], [0], [0], [1], [0, 0, 1, 1], [], []>} : vector<16x256xf32>, vector<256x640xf32>, vector<16x640xf32> -> vector<16x640xf32>
    %cst_13 = arith.constant dense<0.000000e+00> : vector<16x640xf32>
    %14 = tpu.matmul %12, %6, %cst_13 {dimension_numbers = #tpu.dot_dimension_numbers<[1], [0], [0], [1], [0, 0, 1, 1], [], []>} : vector<16x256xf32>, vector<256x640xf32>, vector<16x640xf32> -> vector<16x640xf32>
    %15 = arith.addf %13, %14 : vector<16x640xf32>
    %16 = vector.shape_cast %15 : vector<16x640xf32> to vector<1x16x640xf32>
    %17 = vector.extract_strided_slice %16 {offsets = [0, 0, 0], sizes = [1, 16, 256], strides = [1, 1, 1]} : vector<1x16x640xf32> to vector<1x16x256xf32>
    %18 = vector.extract_strided_slice %16 {offsets = [0, 0, 256], sizes = [1, 16, 256], strides = [1, 1, 1]} : vector<1x16x640xf32> to vector<1x16x256xf32>
    %19 = vector.extract_strided_slice %16 {offsets = [0, 0, 512], sizes = [1, 16, 128], strides = [1, 1, 1]} : vector<1x16x640xf32> to vector<1x16x128xf32>
    %20 = arith.mulf %17, %17 : vector<1x16x256xf32>
    %21 = arith.mulf %18, %18 : vector<1x16x256xf32>
    %22 = arith.addf %20, %21 : vector<1x16x256xf32>
    %cst_14 = arith.constant 1.000000e-10 : f32
    %23 = vector.broadcast %cst_14 : f32 to vector<1x16x256xf32>
    %24 = arith.maximumf %22, %23 : vector<1x16x256xf32>
    %25 = math.log %24 : vector<1x16x256xf32>
    %26 = vector.broadcast %3 : vector<1x16x1xf32> to vector<1x16x256xf32>
    %27 = arith.mulf %25, %26 : vector<1x16x256xf32>
    %28 = arith.mulf %19, %19 : vector<1x16x128xf32>
    %cst_15 = arith.constant 1.000000e-10 : f32
    %29 = vector.broadcast %cst_15 : f32 to vector<1x16x128xf32>
    %30 = arith.maximumf %28, %29 : vector<1x16x128xf32>
    %31 = math.log %30 : vector<1x16x128xf32>
    %32 = vector.shape_cast %4 : vector<1x128xf32> to vector<1x1x128xf32>
    %33 = vector.broadcast %3 : vector<1x16x1xf32> to vector<1x16x128xf32>
    %34 = vector.broadcast %32 : vector<1x1x128xf32> to vector<1x16x128xf32>
    %35 = arith.mulf %33, %34 : vector<1x16x128xf32>
    %36 = arith.mulf %31, %35 : vector<1x16x128xf32>
    %c0_16 = arith.constant 0 : index
    %c0_17 = arith.constant 0 : index
    %c0_18 = arith.constant 0 : index
    %c0_19 = arith.constant 0 : index
    %37 = vector.load %arg5[%c0_16, %c0_17, %c0_18, %c0_19] : memref<1x1x17x256xf32, #tpu.memory_space<vmem>>, vector<1x1x17x256xf32>
    %38 = vector.shape_cast %37 : vector<1x1x17x256xf32> to vector<1x17x256xf32>
    %39 = vector.extract_strided_slice %38 {offsets = [0, 0, 0], sizes = [1, 16, 256], strides = [1, 1, 1]} : vector<1x17x256xf32> to vector<1x16x256xf32>
    %40 = vector.shape_cast %39 : vector<1x16x256xf32> to vector<16x256xf32>
    %41 = vector.extract_strided_slice %38 {offsets = [0, 1, 0], sizes = [1, 16, 256], strides = [1, 1, 1]} : vector<1x17x256xf32> to vector<1x16x256xf32>
    %42 = vector.shape_cast %41 : vector<1x16x256xf32> to vector<16x256xf32>
    %cst_20 = arith.constant dense<0.000000e+00> : vector<16x640xf32>
    %43 = tpu.matmul %40, %5, %cst_20 {dimension_numbers = #tpu.dot_dimension_numbers<[1], [0], [0], [1], [0, 0, 1, 1], [], []>} : vector<16x256xf32>, vector<256x640xf32>, vector<16x640xf32> -> vector<16x640xf32>
    %cst_21 = arith.constant dense<0.000000e+00> : vector<16x640xf32>
    %44 = tpu.matmul %42, %6, %cst_21 {dimension_numbers = #tpu.dot_dimension_numbers<[1], [0], [0], [1], [0, 0, 1, 1], [], []>} : vector<16x256xf32>, vector<256x640xf32>, vector<16x640xf32> -> vector<16x640xf32>
    %45 = arith.addf %43, %44 : vector<16x640xf32>
    %46 = vector.shape_cast %45 : vector<16x640xf32> to vector<1x16x640xf32>
    %47 = vector.extract_strided_slice %46 {offsets = [0, 0, 0], sizes = [1, 16, 256], strides = [1, 1, 1]} : vector<1x16x640xf32> to vector<1x16x256xf32>
    %48 = vector.extract_strided_slice %46 {offsets = [0, 0, 256], sizes = [1, 16, 256], strides = [1, 1, 1]} : vector<1x16x640xf32> to vector<1x16x256xf32>
    %49 = vector.extract_strided_slice %46 {offsets = [0, 0, 512], sizes = [1, 16, 128], strides = [1, 1, 1]} : vector<1x16x640xf32> to vector<1x16x128xf32>
    %50 = arith.mulf %47, %47 : vector<1x16x256xf32>
    %51 = arith.mulf %48, %48 : vector<1x16x256xf32>
    %52 = arith.addf %50, %51 : vector<1x16x256xf32>
    %cst_22 = arith.constant 1.000000e-10 : f32
    %53 = vector.broadcast %cst_22 : f32 to vector<1x16x256xf32>
    %54 = arith.maximumf %52, %53 : vector<1x16x256xf32>
    %55 = math.log %54 : vector<1x16x256xf32>
    %56 = vector.broadcast %3 : vector<1x16x1xf32> to vector<1x16x256xf32>
    %57 = arith.mulf %55, %56 : vector<1x16x256xf32>
    %58 = arith.mulf %49, %49 : vector<1x16x128xf32>
    %cst_23 = arith.constant 1.000000e-10 : f32
    %59 = vector.broadcast %cst_23 : f32 to vector<1x16x128xf32>
    %60 = arith.maximumf %58, %59 : vector<1x16x128xf32>
    %61 = math.log %60 : vector<1x16x128xf32>
    %62 = vector.shape_cast %4 : vector<1x128xf32> to vector<1x1x128xf32>
    %63 = vector.broadcast %3 : vector<1x16x1xf32> to vector<1x16x128xf32>
    %64 = vector.broadcast %62 : vector<1x1x128xf32> to vector<1x16x128xf32>
    %65 = arith.mulf %63, %64 : vector<1x16x128xf32>
    %66 = arith.mulf %61, %65 : vector<1x16x128xf32>
    %c0_24 = arith.constant 0 : index
    %c0_25 = arith.constant 0 : index
    %67 = vector.load %arg9[%c0_24, %c0_25] : memref<1x1xf32, #tpu.memory_space<vmem>>, vector<1x1xf32>
    %68 = arith.mulf %27, %27 : vector<1x16x256xf32>
    %69 = arith.mulf %36, %36 : vector<1x16x128xf32>
    %cst_26 = arith.constant dense<0.000000e+00> : vector<1xf32>
    %70 = vector.multi_reduction <add>, %68, %cst_26 [1, 2] : vector<1x16x256xf32> to vector<1xf32>
    %71 = vector.shape_cast %70 : vector<1xf32> to vector<1x1x1xf32>
    %cst_27 = arith.constant dense<0.000000e+00> : vector<1xf32>
    %72 = vector.multi_reduction <add>, %69, %cst_27 [1, 2] : vector<1x16x128xf32> to vector<1xf32>
    %73 = vector.shape_cast %72 : vector<1xf32> to vector<1x1x1xf32>
    %74 = arith.addf %71, %73 : vector<1x1x1xf32>
    %75 = vector.shape_cast %74 : vector<1x1x1xf32> to vector<1x1xf32>
    %76 = arith.addf %67, %75 : vector<1x1xf32>
    %c0_28 = arith.constant 0 : index
    %c0_29 = arith.constant 0 : index
    %77 = vector.load %arg9[%c0_28, %c0_29] : memref<1x1xf32, #tpu.memory_space<vmem>>, vector<1x1xf32>
    tpu.vector_store %arg9[%c0_28, %c0_29], %76 {strides = array<i32>} : memref<1x1xf32, #tpu.memory_space<vmem>>, vector<1x1xf32>,
    %c0_30 = arith.constant 0 : index
    %c0_31 = arith.constant 0 : index
    %78 = vector.load %arg10[%c0_30, %c0_31] : memref<1x1xf32, #tpu.memory_space<vmem>>, vector<1x1xf32>
    %79 = arith.mulf %27, %57 : vector<1x16x256xf32>
    %80 = arith.mulf %36, %66 : vector<1x16x128xf32>
    %cst_32 = arith.constant dense<0.000000e+00> : vector<1xf32>
    %81 = vector.multi_reduction <add>, %79, %cst_32 [1, 2] : vector<1x16x256xf32> to vector<1xf32>
    %82 = vector.shape_cast %81 : vector<1xf32> to vector<1x1x1xf32>
    %cst_33 = arith.constant dense<0.000000e+00> : vector<1xf32>
    %83 = vector.multi_reduction <add>, %80, %cst_33 [1, 2] : vector<1x16x128xf32> to vector<1xf32>
    %84 = vector.shape_cast %83 : vector<1xf32> to vector<1x1x1xf32>
    %85 = arith.addf %82, %84 : vector<1x1x1xf32>
    %86 = vector.shape_cast %85 : vector<1x1x1xf32> to vector<1x1xf32>
    %87 = arith.addf %78, %86 : vector<1x1xf32>
    %c0_34 = arith.constant 0 : index
    %c0_35 = arith.constant 0 : index
    %88 = vector.load %arg10[%c0_34, %c0_35] : memref<1x1xf32, #tpu.memory_space<vmem>>, vector<1x1xf32>
    tpu.vector_store %arg10[%c0_34, %c0_35], %87 {strides = array<i32>} : memref<1x1xf32, #tpu.memory_space<vmem>>, vector<1x1xf32>,
    %c0_36 = arith.constant 0 : index
    %c0_37 = arith.constant 0 : index
    %89 = vector.load %arg11[%c0_36, %c0_37] : memref<1x1xf32, #tpu.memory_space<vmem>>, vector<1x1xf32>
    %90 = arith.mulf %57, %57 : vector<1x16x256xf32>
    %91 = arith.mulf %66, %66 : vector<1x16x128xf32>
    %cst_38 = arith.constant dense<0.000000e+00> : vector<1xf32>
    %92 = vector.multi_reduction <add>, %90, %cst_38 [1, 2] : vector<1x16x256xf32> to vector<1xf32>
    %93 = vector.shape_cast %92 : vector<1xf32> to vector<1x1x1xf32>
    %cst_39 = arith.constant dense<0.000000e+00> : vector<1xf32>
    %94 = vector.multi_reduction <add>, %91, %cst_39 [1, 2] : vector<1x16x128xf32> to vector<1xf32>
    %95 = vector.shape_cast %94 : vector<1xf32> to vector<1x1x1xf32>
    %96 = arith.addf %93, %95 : vector<1x1x1xf32>
    %97 = vector.shape_cast %96 : vector<1x1x1xf32> to vector<1x1xf32>
    %98 = arith.addf %89, %97 : vector<1x1xf32>
    %c0_40 = arith.constant 0 : index
    %c0_41 = arith.constant 0 : index
    %99 = vector.load %arg11[%c0_40, %c0_41] : memref<1x1xf32, #tpu.memory_space<vmem>>, vector<1x1xf32>
    tpu.vector_store %arg11[%c0_40, %c0_41], %98 {strides = array<i32>} : memref<1x1xf32, #tpu.memory_space<vmem>>, vector<1x1xf32>,
    %c0_i32_42 = arith.constant 0 : i32
    %100 = arith.cmpi eq, %arg1, %c0_i32_42 : i32
    %101 = arith.extui %100 : i1 to i32
    %c0_i32_43 = arith.constant 0 : i32
    %102 = arith.cmpi ne, %101, %c0_i32_43 : i32
    scf.if %102 {
      %c0_44 = arith.constant 0 : index
      %c0_45 = arith.constant 0 : index
      %103 = vector.load %arg9[%c0_44, %c0_45] : memref<1x1xf32, #tpu.memory_space<vmem>>, vector<1x1xf32>
      %c0_46 = arith.constant 0 : index
      %c0_47 = arith.constant 0 : index
      %104 = vector.load %arg10[%c0_46, %c0_47] : memref<1x1xf32, #tpu.memory_space<vmem>>, vector<1x1xf32>
      %c0_48 = arith.constant 0 : index
      %c0_49 = arith.constant 0 : index
      %105 = vector.load %arg11[%c0_48, %c0_49] : memref<1x1xf32, #tpu.memory_space<vmem>>, vector<1x1xf32>
      %106 = arith.mulf %104, %104 : vector<1x1xf32>
      %107 = arith.divf %106, %103 : vector<1x1xf32>
      %108 = arith.subf %105, %107 : vector<1x1xf32>
      %cst_50 = arith.constant 0.000000e+00 : f32
      %109 = vector.broadcast %cst_50 : f32 to vector<1x1xf32>
      %110 = arith.maximumf %108, %109 : vector<1x1xf32>
      %cst_51 = arith.constant 18.8611698 : f32
      %111 = vector.broadcast %cst_51 : f32 to vector<1x1xf32>
      %112 = arith.mulf %110, %111 : vector<1x1xf32>
      %cst_52 = arith.constant 0.000000e+00 : f32
      %113 = vector.broadcast %cst_52 : f32 to vector<1x1xf32>
      %114 = arith.cmpf ogt, %103, %113 : vector<1x1xf32>
      %cst_53 = arith.constant 0.000000e+00 : f32
      %115 = vector.broadcast %cst_53 : f32 to vector<1x1xf32>
      %116 = arith.select %114, %112, %115 : vector<1x1xi1>, vector<1x1xf32>
      %117 = vector.shape_cast %116 : vector<1x1xf32> to vector<1x1xf32>
      %118 = vector.broadcast %117 : vector<1x1xf32> to vector<1x128xf32>
      %c0_54 = arith.constant 0 : index
      %c0_55 = arith.constant 0 : index
      %c0_56 = arith.constant 0 : index
      %119 = vector.load %arg8[%c0_54, %c0_55, %c0_56] : memref<1x1x128xf32, #tpu.memory_space<vmem>>, vector<1x1x128xf32>
      %120 = vector.shape_cast %119 : vector<1x1x128xf32> to vector<1x128xf32>
      %121 = vector.shape_cast %118 : vector<1x128xf32> to vector<1x1x128xf32>
      tpu.vector_store %arg8[%c0_54, %c0_55, %c0_56], %121 {strides = array<i32>} : memref<1x1x128xf32, #tpu.memory_space<vmem>>, vector<1x1x128xf32>,
    } else {
    }
    return
  }
  func.func @transform_0(%arg0: i32, %arg1: i32) -> (i32, i32, i32) {
    %c0_i32 = arith.constant 0 : i32
    %c0_i32_0 = arith.constant 0 : i32
    return %arg0, %arg1, %c0_i32 : i32, i32, i32
  }
  func.func @transform_1(%arg0: i32, %arg1: i32) -> (i32, i32) {
    %c0_i32 = arith.constant 0 : i32
    %c0_i32_0 = arith.constant 0 : i32
    %c0_i32_1 = arith.constant 0 : i32
    return %c0_i32, %c0_i32_0 : i32, i32
  }
  func.func @transform_2(%arg0: i32, %arg1: i32) -> (i32, i32, i32, i32) {
    %c0_i32 = arith.constant 0 : i32
    %c0_i32_0 = arith.constant 0 : i32
    %c0_i32_1 = arith.constant 0 : i32
    return %arg0, %arg1, %c0_i32, %c0_i32_0 : i32, i32, i32, i32
  }
  func.func @transform_3(%arg0: i32, %arg1: i32) -> (i32, i32, i32, i32) {
    %c0_i32 = arith.constant 0 : i32
    %c0_i32_0 = arith.constant 0 : i32
    %c0_i32_1 = arith.constant 0 : i32
    return %arg0, %arg1, %c0_i32, %c0_i32_0 : i32, i32, i32, i32
  }
  func.func @transform_4(%arg0: i32, %arg1: i32) -> (i32, i32) {
    %c0_i32 = arith.constant 0 : i32
    %c0_i32_0 = arith.constant 0 : i32
    %c0_i32_1 = arith.constant 0 : i32
    return %c0_i32, %c0_i32_0 : i32, i32
  }
  func.func @transform_5(%arg0: i32, %arg1: i32) -> (i32, i32) {
    %c0_i32 = arith.constant 0 : i32
    %c0_i32_0 = arith.constant 0 : i32
    %c0_i32_1 = arith.constant 0 : i32
    return %c0_i32, %c0_i32_0 : i32, i32
  }
  func.func @transform_6(%arg0: i32, %arg1: i32) -> (i32, i32, i32) {
    %c0_i32 = arith.constant 0 : i32
    %c0_i32_0 = arith.constant 0 : i32
    %c0_i32_1 = arith.constant 0 : i32
    return %arg0, %c0_i32, %c0_i32_0 : i32, i32, i32
  }
}

</mosaic_0001>

<llo_original>
// kernel: tpu_custom_call.1
$region0: #{tpu_custom_call.1}
  #allocation0 [shape = 'u32[]', space=smem, size = 0x4, offset = 0x4, fixed_abs, tag = 'smem constant byte address 0x4 - core index']
  #allocation1 [shape = 'u32[144,128]{1,0:T(1,128)}', space=vmem, size = 0x12000, scoped, tag = 'internal scratch']
  #allocation2 [shape = 'f32[1,1]{1,0:T(1,128)}', space=vmem, size = 0x200, scoped, tag = 'scratch operand']
  #allocation3 [shape = 'f32[1,1]{1,0:T(1,128)}', space=vmem, size = 0x200, scoped, tag = 'scratch operand']
  #allocation4 [shape = 'f32[1,1]{1,0:T(1,128)}', space=vmem, size = 0x200, scoped, tag = 'scratch operand']
  %s0 = inlined_call_operand.vmem [shape: f32[2,16,1], index: 0, kind: input, shape index: {}]
  %s1 = inlined_call_operand.vmem [shape: f32[1,128], index: 1, kind: input, shape index: {}]
  %s2 = inlined_call_operand.vmem [shape: f32[2,1,17,256], index: 2, kind: input, shape index: {}]
  %s3 = inlined_call_operand.vmem [shape: f32[2,1,17,256], index: 3, kind: input, shape index: {}]
  %s4 = inlined_call_operand.hbm [shape: f32[256,640], index: 4, kind: input, shape index: {}]
  %s5 = inlined_call_operand.hbm [shape: f32[256,640], index: 5, kind: input, shape index: {}]
  %s6 = inlined_call_operand.hbm [shape: f32[2,1,128], index: 6, kind: output, shape index: {}]
  %s7 = sld [smem:[#allocation0]]
  $region73: #{tpu_custom_call.1} parent=0
    _
  %s9 = ssub.s32 1, %s7
  %s10 = scalar_select 0, %s9, %s7
  $region1: #{tpu_custom_call.1} parent=0
    #allocation5 [shape = 'u8[655360]{0}', space=vmem, size = 0xa0000, scoped, tag = 'input window, operand 4, single buffered']
    #allocation6 [shape = 's32[2]{0}', space=sflag, size = 0x8, scoped, tag = 'scoped memory for tpu_custom_call.1']
    #allocation7 [shape = 's32[2]{0}', space=sflag, size = 0x8, scoped, tag = 'scoped memory for tpu_custom_call.1']
    #allocation8 [shape = 'u8[655360]{0}', space=vmem, size = 0xa0000, scoped, tag = 'input window, operand 5, single buffered']
    #allocation9 [shape = 's32[1]{0}', space=sflag, size = 0x4, scoped, tag = 'scoped memory for tpu_custom_call.1']
    #allocation10 [shape = 'u8[1024]{0}', space=vmem, size = 0x400, scoped, tag = 'output window, operand 0']
    %11 = vsyncpa [#allocation6], 0
    %12 = vsyncpa [#allocation9], 0
    %13 = vsyncpa [#allocation7], 0
    %s14 = scalar_lea.sflag [#allocation7], 1
    %15 = vsyncpa %s14, 0
    loop: start=0, step=1, limit=4
    $region2: #{tpu_custom_call.1} parent=1 // loop_pre_header
      _
    $region3: #{tpu_custom_call.1} parent=1 // loop_header
      %s17 = sphi 0, %s21
      %p18 = scmp.ge.s32.totalorder %s17, 4
      %s24 = sphi 0, %s36
      %s25 = sphi 0, %s32
      %s26 = sphi 0, %s24
      %s27 = sphi 0, %s25
      %s28 = sphi 0, %s26
      %s29 = sphi 0, %s27
      %s41 = sphi 0, %s43
      %s44 = sphi 0, %s41
      %s45 = sphi 0, %s44
      %s61 = sphi 0, %s45
      %s65 = sphi 0, %s65
      %s67 = sphi 0, %s65
      %s68 = sphi 0, %s67
      %s82 = sphi 0, %s68
      %s90 = sphi 0, %s92
      %s93 = sphi 0, %s90
      %s94 = sphi 0, %s93
      %s110 = sphi 0, %s94
      %s118 = sphi 0, %s120
      %s121 = sphi 0, %s118
      %s122 = sphi 0, %s121
      %s138 = sphi 0, %s122
      %s142 = sphi 0, %s142
      %s144 = sphi 0, %s142
      %s145 = sphi 0, %s144
      %s159 = sphi 0, %s145
      %s163 = sphi 0, %s163
      %s165 = sphi 0, %s163
      %s166 = sphi 0, %s165
      %s180 = sphi 0, %s166
      %s186 = sphi 0, %s188
      %s189 = sphi 0, %s186
      %s190 = sphi 0, %s189
      %s206 = sphi 0, %s190
    $region4: #{tpu_custom_call.1} parent=1 // loop_header_branch
      %20 = sbr.rel (%p18) target = $region8
    $region5: #{tpu_custom_call.1} parent=1 // loop_body
      %s22 = ssub.s32 %s17, 1
      %s23 = ssub.s32 %s17, 2
      %s30 = sadd.s32 1, %s25
      %p31 = scmp.ge.s32.totalorder %s30, 1
      %s32 = scalar_select %p31, 0, %s30
      %s33 = sadd.s32 1, %s24
      %s34 = scalar_select %p31, %s33, %s24
      %p35 = scmp.ge.s32.totalorder %s34, 2
      %s36 = scalar_select %p35, 0, %s34
      %s37 = ssub.s32 %s24, %s36
      %s38 = ssub.s32 %s25, %s32
      %s39 = sor.u32 %s37, %s38
      %p40 = scmp.eq.s32.totalorder %s39, 0
      %s42 = sadd.s32 %s41, 1
      %s43 = scalar_select %p40, %s41, %s42
      %p46 = pneg %p40
      %p47 = scmp.eq.s32.totalorder %s17, 1
      %p48 = por %p46, %p47
      %p49 = scmp.ne.s32.totalorder %s41, %s44
      %p50 = scmp.eq.s32.totalorder %s17, 0
      %p51 = por %p49, %p50
      %p52 = scmp.ne.s32.totalorder %s41, %s44
      %p53 = scmp.eq.s32.totalorder %s22, 1
      %p54 = por %p52, %p53
      %p55 = scmp.ne.s32.totalorder %s44, %s45
      %p56 = scmp.eq.s32.totalorder %s22, 0
      %p57 = por %p55, %p56
      %p58 = scmp.ne.s32.totalorder %s44, %s45
      %p59 = scmp.eq.s32.totalorder %s23, 1
      %p60 = por %p58, %p59
      %p62 = scmp.ne.s32.totalorder %s45, %s61
      %p63 = scmp.eq.s32.totalorder %s23, 0
      %p64 = por %p62, %p63
      %s66 = sadd.s32 %s65, 1
      %p69 = scmp.eq.s32.totalorder %s17, 1
      %p70 = scmp.ne.s32.totalorder %s65, %s67
      %p71 = scmp.eq.s32.totalorder %s17, 0
      %p72 = por %p70, %p71
      %p73 = scmp.ne.s32.totalorder %s65, %s67
      %p74 = scmp.eq.s32.totalorder %s22, 1
      %p75 = por %p73, %p74
      %p76 = scmp.ne.s32.totalorder %s67, %s68
      %p77 = scmp.eq.s32.totalorder %s22, 0
      %p78 = por %p76, %p77
      %p79 = scmp.ne.s32.totalorder %s67, %s68
      %p80 = scmp.eq.s32.totalorder %s23, 1
      %p81 = por %p79, %p80
      %p83 = scmp.ne.s32.totalorder %s68, %s82
      %p84 = scmp.eq.s32.totalorder %s23, 0
      %p85 = por %p83, %p84
      %s86 = ssub.s32 %s24, %s36
      %s87 = ssub.s32 %s25, %s32
      %s88 = sor.u32 %s86, %s87
      %p89 = scmp.eq.s32.totalorder %s88, 0
      %s91 = sadd.s32 %s90, 1
      %s92 = scalar_select %p89, %s90, %s91
      %p95 = pneg %p89
      %p96 = scmp.eq.s32.totalorder %s17, 1
      %p97 = por %p95, %p96
      %p98 = scmp.ne.s32.totalorder %s90, %s93
      %p99 = scmp.eq.s32.totalorder %s17, 0
      %p100 = por %p98, %p99
      %p101 = scmp.ne.s32.totalorder %s90, %s93
      %p102 = scmp.eq.s32.totalorder %s22, 1
      %p103 = por %p101, %p102
      %p104 = scmp.ne.s32.totalorder %s93, %s94
      %p105 = scmp.eq.s32.totalorder %s22, 0
      %p106 = por %p104, %p105
      %p107 = scmp.ne.s32.totalorder %s93, %s94
      %p108 = scmp.eq.s32.totalorder %s23, 1
      %p109 = por %p107, %p108
      %p111 = scmp.ne.s32.totalorder %s94, %s110
      %p112 = scmp.eq.s32.totalorder %s23, 0
      %p113 = por %p111, %p112
      %s114 = ssub.s32 %s24, %s36
      %s115 = ssub.s32 %s25, %s32
      %s116 = sor.u32 %s114, %s115
      %p117 = scmp.eq.s32.totalorder %s116, 0
      %s119 = sadd.s32 %s118, 1
      %s120 = scalar_select %p117, %s118, %s119
      %p123 = pneg %p117
      %p124 = scmp.eq.s32.totalorder %s17, 1
      %p125 = por %p123, %p124
      %p126 = scmp.ne.s32.totalorder %s118, %s121
      %p127 = scmp.eq.s32.totalorder %s17, 0
      %p128 = por %p126, %p127
      %p129 = scmp.ne.s32.totalorder %s118, %s121
      %p130 = scmp.eq.s32.totalorder %s22, 1
      %p131 = por %p129, %p130
      %p132 = scmp.ne.s32.totalorder %s121, %s122
      %p133 = scmp.eq.s32.totalorder %s22, 0
      %p134 = por %p132, %p133
      %p135 = scmp.ne.s32.totalorder %s121, %s122
      %p136 = scmp.eq.s32.totalorder %s23, 1
      %p137 = por %p135, %p136
      %p139 = scmp.ne.s32.totalorder %s122, %s138
      %p140 = scmp.eq.s32.totalorder %s23, 0
      %p141 = por %p139, %p140
      %s143 = sadd.s32 %s142, 1
      %p146 = scmp.eq.s32.totalorder %s17, 1
      %p147 = scmp.ne.s32.totalorder %s142, %s144
      %p148 = scmp.eq.s32.totalorder %s17, 0
      %p149 = por %p147, %p148
      %p150 = scmp.ne.s32.totalorder %s142, %s144
      %p151 = scmp.eq.s32.totalorder %s22, 1
      %p152 = por %p150, %p151
      %p153 = scmp.ne.s32.totalorder %s144, %s145
      %p154 = scmp.eq.s32.totalorder %s22, 0
      %p155 = por %p153, %p154
      %p156 = scmp.ne.s32.totalorder %s144, %s145
      %p157 = scmp.eq.s32.totalorder %s23, 1
      %p158 = por %p156, %p157
      %p160 = scmp.ne.s32.totalorder %s145, %s159
      %p161 = scmp.eq.s32.totalorder %s23, 0
      %p162 = por %p160, %p161
      %s164 = sadd.s32 %s163, 1
      %p167 = scmp.eq.s32.totalorder %s17, 1
      %p168 = scmp.ne.s32.totalorder %s163, %s165
      %p169 = scmp.eq.s32.totalorder %s17, 0
      %p170 = por %p168, %p169
      %p171 = scmp.ne.s32.totalorder %s163, %s165
      %p172 = scmp.eq.s32.totalorder %s22, 1
      %p173 = por %p171, %p172
      %p174 = scmp.ne.s32.totalorder %s165, %s166
      %p175 = scmp.eq.s32.totalorder %s22, 0
      %p176 = por %p174, %p175
      %p177 = scmp.ne.s32.totalorder %s165, %s166
      %p178 = scmp.eq.s32.totalorder %s23, 1
      %p179 = por %p177, %p178
      %p181 = scmp.ne.s32.totalorder %s166, %s180
      %p182 = scmp.eq.s32.totalorder %s23, 0
      %p183 = por %p181, %p182
      %s184 = ssub.s32 %s24, %s36
      %p185 = scmp.eq.s32.totalorder %s184, 0
      %s187 = sadd.s32 %s186, 1
      %s188 = scalar_select %p185, %s186, %s187
      %p191 = pneg %p185
      %p192 = scmp.eq.s32.totalorder %s17, 1
      %p193 = por %p191, %p192
      %p194 = scmp.ne.s32.totalorder %s186, %s189
      %p195 = scmp.eq.s32.totalorder %s17, 0
      %p196 = por %p194, %p195
      %p197 = scmp.ne.s32.totalorder %s186, %s189
      %p198 = scmp.eq.s32.totalorder %s22, 1
      %p199 = por %p197, %p198
      %p200 = scmp.ne.s32.totalorder %s189, %s190
      %p201 = scmp.eq.s32.totalorder %s22, 0
      %p202 = por %p200, %p201
      %p203 = scmp.ne.s32.totalorder %s189, %s190
      %p204 = scmp.eq.s32.totalorder %s23, 1
      %p205 = por %p203, %p204
      %p207 = scmp.ne.s32.totalorder %s190, %s206
      %p208 = scmp.eq.s32.totalorder %s23, 0
      %p209 = por %p207, %p208
      %p210 = scmp.le.s32.totalorder 1, %s17
      %p211 = scmp.lt.s32.totalorder %s17, 3
      %p212 = pnand %p210, %p211
      %p213 = pneg %p212
      // Predicated region
      $region9: #{tpu_custom_call.1} parent=5 // pred_check
        _
      $region10: #{tpu_custom_call.1} parent=5 // pred_check_branch
        %215 = sbr.rel (%p212) target = $region12
      $region11: #{tpu_custom_call.1} parent=5 // pred_region
        %s216 = ssub.s32 %s17, 1
        // Predicated region
        $region13: #{tpu_custom_call.1} parent=11 // pred_check
          %p217 = pneg %p78
        $region14: #{tpu_custom_call.1} parent=11 // pred_check_branch
          %219 = sbr.rel (%p217) target = $region16
        $region15: #{tpu_custom_call.1} parent=11 // pred_region
          _
        $region16: #{tpu_custom_call.1} parent=11 // pred_fallthru
          _
        // Predicated region
        $region17: #{tpu_custom_call.1} parent=11 // pred_check
          %p220 = pneg %p155
        $region18: #{tpu_custom_call.1} parent=11 // pred_check_branch
          %222 = sbr.rel (%p220) target = $region20
        $region19: #{tpu_custom_call.1} parent=11 // pred_region
          %s224 = ssub.s32 20480, 20480
          %225 = vsyncadd [#allocation6], %s224
          %s226 = sshll.u32 [#allocation5], 4
          %s227 = int_to_ptr.vmem [resolvable:$true] %s226
          %232 = dma.hbm_to_vmem [thread:$0]  %s4, 20480, %s227, [#allocation6], 640, 640, 40
        $region20: #{tpu_custom_call.1} parent=11 // pred_fallthru
          _
        // Predicated region
        $region21: #{tpu_custom_call.1} parent=11 // pred_check
          %p233 = pneg %p176
        $region22: #{tpu_custom_call.1} parent=11 // pred_check_branch
          %235 = sbr.rel (%p233) target = $region24
        $region23: #{tpu_custom_call.1} parent=11 // pred_region
          %s237 = ssub.s32 20480, 20480
          %238 = vsyncadd [#allocation9], %s237
          %s239 = sshll.u32 [#allocation8], 4
          %s240 = int_to_ptr.vmem [resolvable:$true] %s239
          %245 = dma.hbm_to_vmem [thread:$0]  %s5, 20480, %s240, [#allocation9], 640, 640, 40
        $region24: #{tpu_custom_call.1} parent=11 // pred_fallthru
          _
      $region12: #{tpu_custom_call.1} parent=5 // pred_fallthru
        _
      %p246 = scmp.lt.s32.totalorder %s17, 2
      // Predicated region
      $region25: #{tpu_custom_call.1} parent=5 // pred_check
        %p247 = pneg %p246
      $region26: #{tpu_custom_call.1} parent=5 // pred_check_branch
        %249 = sbr.rel (%p247) target = $region28
      $region27: #{tpu_custom_call.1} parent=5 // pred_region
        // Predicated region
        $region29: #{tpu_custom_call.1} parent=27 // pred_check
          %p250 = pneg %p51
        $region30: #{tpu_custom_call.1} parent=27 // pred_check_branch
          %252 = sbr.rel (%p250) target = $region32
        $region31: #{tpu_custom_call.1} parent=27 // pred_region
          %s253 = smul.u32 2, %s25
          %p254 = scmp.lt.s32.totalorder %s24, 1
          %s255 = scalar_select %p254, %s24, 1
          %p256 = scmp.lt.s32.totalorder %s253, 1
          %s257 = scalar_select %p256, %s253, 1
          %s258 = smul.addr %s255, 2
          %s259 = sadd.s32 %s257, %s258
          %s260 = smul.addr %s259, 8
          %s261 = scalar_lea.vmem %s0, %s260
          %s262 = smul.u32 2, %s25
        $region32: #{tpu_custom_call.1} parent=27 // pred_fallthru
          _
        // Predicated region
        $region33: #{tpu_custom_call.1} parent=27 // pred_check
          %p263 = pneg %p100
        $region34: #{tpu_custom_call.1} parent=27 // pred_check_branch
          %265 = sbr.rel (%p263) target = $region36
        $region35: #{tpu_custom_call.1} parent=27 // pred_region
          %p266 = scmp.lt.s32.totalorder %s24, 1
          %s267 = scalar_select %p266, %s24, 1
          %p268 = scmp.lt.s32.totalorder %s25, 0
          %s269 = scalar_select %p268, %s25, 0
          %s270 = smul.addr %s269, 6
          %s271 = smul.addr %s267, 6
          %s272 = sadd.s32 %s270, %s271
          %s273 = smul.addr %s272, 8
          %s274 = scalar_lea.vmem %s2, %s273
        $region36: #{tpu_custom_call.1} parent=27 // pred_fallthru
          _
        // Predicated region
        $region37: #{tpu_custom_call.1} parent=27 // pred_check
          %p275 = pneg %p128
        $region38: #{tpu_custom_call.1} parent=27 // pred_check_branch
          %277 = sbr.rel (%p275) target = $region40
        $region39: #{tpu_custom_call.1} parent=27 // pred_region
          %p278 = scmp.lt.s32.totalorder %s24, 1
          %s279 = scalar_select %p278, %s24, 1
          %p280 = scmp.lt.s32.totalorder %s25, 0
          %s281 = scalar_select %p280, %s25, 0
          %s282 = smul.addr %s281, 6
          %s283 = smul.addr %s279, 6
          %s284 = sadd.s32 %s282, %s283
          %s285 = smul.addr %s284, 8
          %s286 = scalar_lea.vmem %s3, %s285
        $region40: #{tpu_custom_call.1} parent=27 // pred_fallthru
          _
      $region28: #{tpu_custom_call.1} parent=5 // pred_fallthru
        _
      %p287 = scmp.le.s32.totalorder 1, %s17
      %p288 = scmp.lt.s32.totalorder %s17, 3
      %p289 = pnand %p287, %p288
      %p290 = pneg %p289
      // Predicated region
      $region41: #{tpu_custom_call.1} parent=5 // pred_check
        _
      $region42: #{tpu_custom_call.1} parent=5 // pred_check_branch
        %292 = sbr.rel (%p289) target = $region44
      $region43: #{tpu_custom_call.1} parent=5 // pred_region
        %s293 = ssub.s32 %s17, 1
        // Predicated region
        $region45: #{tpu_custom_call.1} parent=43 // pred_check
          %p294 = pneg %p155
        $region46: #{tpu_custom_call.1} parent=43 // pred_check_branch
          %296 = sbr.rel (%p294) target = $region48
        $region47: #{tpu_custom_call.1} parent=43 // pred_region
          %297 = dma.done [#allocation6], 20480
        $region48: #{tpu_custom_call.1} parent=43 // pred_fallthru
          _
        // Predicated region
        $region49: #{tpu_custom_call.1} parent=43 // pred_check
          %p298 = pneg %p176
        $region50: #{tpu_custom_call.1} parent=43 // pred_check_branch
          %300 = sbr.rel (%p298) target = $region52
        $region51: #{tpu_custom_call.1} parent=43 // pred_region
          %301 = dma.done [#allocation9], 20480
        $region52: #{tpu_custom_call.1} parent=43 // pred_fallthru
          _
        %s302 = smul.u32 2, %s27
        %p303 = scmp.lt.s32.totalorder %s26, 1
        %s304 = scalar_select %p303, %s26, 1
        %p305 = scmp.lt.s32.totalorder %s302, 1
        %s306 = scalar_select %p305, %s302, 1
        %s307 = smul.addr %s304, 2
        %s308 = sadd.s32 %s306, %s307
        %s309 = smul.addr %s308, 8
        %s310 = scalar_lea.vmem %s0, %s309
        %p311 = pneg %p57
        %p312 = pneg %p54
        %p313 = pneg %p78
        %p314 = pneg %p75
        %p315 = scmp.lt.s32.totalorder %s26, 1
        %s316 = scalar_select %p315, %s26, 1
        %p317 = scmp.lt.s32.totalorder %s27, 0
        %s318 = scalar_select %p317, %s27, 0
        %s319 = smul.addr %s318, 6
        %s320 = smul.addr %s316, 6
        %s321 = sadd.s32 %s319, %s320
        %s322 = smul.addr %s321, 8
        %s323 = scalar_lea.vmem %s2, %s322
        %p324 = pneg %p106
        %p325 = pneg %p103
        %p326 = scmp.lt.s32.totalorder %s26, 1
        %s327 = scalar_select %p326, %s26, 1
        %p328 = scmp.lt.s32.totalorder %s27, 0
        %s329 = scalar_select %p328, %s27, 0
        %s330 = smul.addr %s329, 6
        %s331 = smul.addr %s327, 6
        %s332 = sadd.s32 %s330, %s331
        %s333 = smul.addr %s332, 8
        %s334 = scalar_lea.vmem %s3, %s333
        %p335 = pneg %p134
        %p336 = pneg %p131
        %p337 = pneg %p155
        %p338 = pneg %p152
        %p339 = pneg %p176
        %p340 = pneg %p173
        %p341 = pneg %p202
        %p342 = pneg %p199
        %s343 = sand.u32 %s189, 1
        %s344 = scalar_lea.sflag [#allocation7], %s343
        %s345 = sand.u32 %s189, 1
        %s346 = scalar_lea.vmem [#allocation10], %s345
        %s347 = smul.u32 2, %s27
        %p348 = scmp.lt.s32.totalorder %s26, 1
        %s349 = scalar_select %p348, %s26, 1
        %p350 = scmp.lt.s32.totalorder %s347, 1
        %s351 = scalar_select %p350, %s347, 1
        %s352 = smul.addr %s349, 2
        %s353 = sadd.s32 %s351, %s352
        %s354 = smul.addr %s353, 8
        %s355 = scalar_lea.vmem %s0, %s354
        %s356 = smul.u32 2, %s27
        %p357 = scmp.lt.s32.totalorder %s26, 1
        %s358 = scalar_select %p357, %s26, 1
        %p359 = scmp.lt.s32.totalorder %s27, 0
        %s360 = scalar_select %p359, %s27, 0
        %s361 = smul.addr %s360, 6
        %s362 = smul.addr %s358, 6
        %s363 = sadd.s32 %s361, %s362
        %s364 = smul.addr %s363, 8
        %s365 = scalar_lea.vmem %s2, %s364
        %p366 = scmp.lt.s32.totalorder %s26, 1
        %s367 = scalar_select %p366, %s26, 1
        %p368 = scmp.lt.s32.totalorder %s27, 0
        %s369 = scalar_select %p368, %s27, 0
        %s370 = smul.addr %s369, 6
        %s371 = smul.addr %s367, 6
        %s372 = sadd.s32 %s370, %s371
        %s373 = smul.addr %s372, 8
        %s374 = scalar_lea.vmem %s3, %s373
        %p375 = scmp.eq.s32.totalorder %s27, 0
        // Predicated region
        $region53: #{tpu_custom_call.1} parent=43 // pred_check
          %p376 = pneg %p375
        $region54: #{tpu_custom_call.1} parent=43 // pred_check_branch
          %378 = sbr.rel (%p376) target = $region56
        $region55: #{tpu_custom_call.1} parent=43 // pred_region
          %vm379 = vcmask 0
          %380 = vst.msk [vmem:[#allocation2] sm:$0x1] %vm379, 0.0
          %381 = vst.msk [vmem:[#allocation3] sm:$0x1] %vm379, 0.0
          %382 = vst.msk [vmem:[#allocation4] sm:$0x1] %vm379, 0.0
        $region56: #{tpu_custom_call.1} parent=43 // pred_fallthru
          _
        %v383 = vld [vmem:[%s355] sm:$0xff]
        %v384 = vld [vmem:[%s355 + $0x8] sm:$0xff]
        %v385 = vld [vmem:[%s1] sm:$0x1]
        %v386 = vld [vmem:[#allocation5] sm:$0xff]
        %v387 = vld [vmem:[#allocation5 + $0x8] sm:$0xff]
        %v388 = vld [vmem:[#allocation5 + $0x10] sm:$0xff]
        %v389 = vld [vmem:[#allocation5 + $0x18] sm:$0xff]
        %v390 = vld [vmem:[#allocation5 + $0x20] sm:$0xff]
        %v391 = vld [vmem:[#allocation5 + $0x28] sm:$0xff]
        %v392 = vld [vmem:[#allocation5 + $0x30] sm:$0xff]
        %v393 = vld [vmem:[#allocation5 + $0x38] sm:$0xff]
        %v394 = vld [vmem:[#allocation5 + $0x40] sm:$0xff]
        %v395 = vld [vmem:[#allocation5 + $0x48] sm:$0xff]
        %v396 = vld [vmem:[#allocation5 + $0x50] sm:$0xff]
        %v397 = vld [vmem:[#allocation5 + $0x58] sm:$0xff]
        %v398 = vld [vmem:[#allocation5 + $0x60] sm:$0xff]
        %v399 = vld [vmem:[#allocation5 + $0x68] sm:$0xff]
        %v400 = vld [vmem:[#allocation5 + $0x70] sm:$0xff]
        %v401 = vld [vmem:[#allocation5 + $0x78] sm:$0xff]
        %v402 = vld [vmem:[#allocation5 + $0x80] sm:$0xff]
        %v403 = vld [vmem:[#allocation5 + $0x88] sm:$0xff]
        %v404 = vld [vmem:[#allocation5 + $0x90] sm:$0xff]
        %v405 = vld [vmem:[#allocation5 + $0x98] sm:$0xff]
        %v406 = vld [vmem:[#allocation5 + $0xa0] sm:$0xff]
        %v407 = vld [vmem:[#allocation5 + $0xa8] sm:$0xff]
        %v408 = vld [vmem:[#allocation5 + $0xb0] sm:$0xff]
        %v409 = vld [vmem:[#allocation5 + $0xb8] sm:$0xff]
        %v410 = vld [vmem:[#allocation5 + $0xc0] sm:$0xff]
        %v411 = vld [vmem:[#allocation5 + $0xc8] sm:$0xff]
        %v412 = vld [vmem:[#allocation5 + $0xd0] sm:$0xff]
        %v413 = vld [vmem:[#allocation5 + $0xd8] sm:$0xff]
        %v414 = vld [vmem:[#allocation5 + $0xe0] sm:$0xff]
        %v415 = vld [vmem:[#allocation5 + $0xe8] sm:$0xff]
        %v416 = vld [vmem:[#allocation5 + $0xf0] sm:$0xff]
        %v417 = vld [vmem:[#allocation5 + $0xf8] sm:$0xff]
        %v418 = vld [vmem:[#allocation5 + $0x100] sm:$0xff]
        %v419 = vld [vmem:[#allocation5 + $0x108] sm:$0xff]
        %v420 = vld [vmem:[#allocation5 + $0x110] sm:$0xff]
        %v421 = vld [vmem:[#allocation5 + $0x118] sm:$0xff]
        %v422 = vld [vmem:[#allocation5 + $0x120] sm:$0xff]
        %v423 = vld [vmem:[#allocation5 + $0x128] sm:$0xff]
        %v424 = vld [vmem:[#allocation5 + $0x130] sm:$0xff]
        %v425 = vld [vmem:[#allocation5 + $0x138] sm:$0xff]
        %v426 = vld [vmem:[#allocation5 + $0x140] sm:$0xff]
        %v427 = vld [vmem:[#allocation5 + $0x148] sm:$0xff]
        %v428 = vld [vmem:[#allocation5 + $0x150] sm:$0xff]
        %v429 = vld [vmem:[#allocation5 + $0x158] sm:$0xff]
        %v430 = vld [vmem:[#allocation5 + $0x160] sm:$0xff]
        %v431 = vld [vmem:[#allocation5 + $0x168] sm:$0xff]
        %v432 = vld [vmem:[#allocation5 + $0x170] sm:$0xff]
        %v433 = vld [vmem:[#allocation5 + $0x178] sm:$0xff]
        %v434 = vld [vmem:[#allocation5 + $0x180] sm:$0xff]
        %v435 = vld [vmem:[#allocation5 + $0x188] sm:$0xff]
        %v436 = vld [vmem:[#allocation5 + $0x190] sm:$0xff]
        %v437 = vld [vmem:[#allocation5 + $0x198] sm:$0xff]
        %v438 = vld [vmem:[#allocation5 + $0x1a0] sm:$0xff]
        %v439 = vld [vmem:[#allocation5 + $0x1a8] sm:$0xff]
        %v440 = vld [vmem:[#allocation5 + $0x1b0] sm:$0xff]
        %v441 = vld [vmem:[#allocation5 + $0x1b8] sm:$0xff]
        %v442 = vld [vmem:[#allocation5 + $0x1c0] sm:$0xff]
        %v443 = vld [vmem:[#allocation5 + $0x1c8] sm:$0xff]
        %v444 = vld [vmem:[#allocation5 + $0x1d0] sm:$0xff]
        %v445 = vld [vmem:[#allocation5 + $0x1d8] sm:$0xff]
        %v446 = vld [vmem:[#allocation5 + $0x1e0] sm:$0xff]
        %v447 = vld [vmem:[#allocation5 + $0x1e8] sm:$0xff]
        %v448 = vld [vmem:[#allocation5 + $0x1f0] sm:$0xff]
        %v449 = vld [vmem:[#allocation5 + $0x1f8] sm:$0xff]
        %v450 = vld [vmem:[#allocation5 + $0x200] sm:$0xff]
        %v451 = vld [vmem:[#allocation5 + $0x208] sm:$0xff]
        %v452 = vld [vmem:[#allocation5 + $0x210] sm:$0xff]
        %v453 = vld [vmem:[#allocation5 + $0x218] sm:$0xff]
        %v454 = vld [vmem:[#allocation5 + $0x220] sm:$0xff]
        %v455 = vld [vmem:[#allocation5 + $0x228] sm:$0xff]
        %v456 = vld [vmem:[#allocation5 + $0x230] sm:$0xff]
        %v457 = vld [vmem:[#allocation5 + $0x238] sm:$0xff]
        %v458 = vld [vmem:[#allocation5 + $0x240] sm:$0xff]
        %v459 = vld [vmem:[#allocation5 + $0x248] sm:$0xff]
        %v460 = vld [vmem:[#allocation5 + $0x250] sm:$0xff]
        %v461 = vld [vmem:[#allocation5 + $0x258] sm:$0xff]
        %v462 = vld [vmem:[#allocation5 + $0x260] sm:$0xff]
        %v463 = vld [vmem:[#allocation5 + $0x268] sm:$0xff]
        %v464 = vld [vmem:[#allocation5 + $0x270] sm:$0xff]
        %v465 = vld [vmem:[#allocation5 + $0x278] sm:$0xff]
        %v466 = vld [vmem:[#allocation5 + $0x280] sm:$0xff]
        %v467 = vld [vmem:[#allocation5 + $0x288] sm:$0xff]
        %v468 = vld [vmem:[#allocation5 + $0x290] sm:$0xff]
        %v469 = vld [vmem:[#allocation5 + $0x298] sm:$0xff]
        %v470 = vld [vmem:[#allocation5 + $0x2a0] sm:$0xff]
        %v471 = vld [vmem:[#allocation5 + $0x2a8] sm:$0xff]
        %v472 = vld [vmem:[#allocation5 + $0x2b0] sm:$0xff]
        %v473 = vld [vmem:[#allocation5 + $0x2b8] sm:$0xff]
        %v474 = vld [vmem:[#allocation5 + $0x2c0] sm:$0xff]
        %v475 = vld [vmem:[#allocation5 + $0x2c8] sm:$0xff]
        %v476 = vld [vmem:[#allocation5 + $0x2d0] sm:$0xff]
        %v477 = vld [vmem:[#allocation5 + $0x2d8] sm:$0xff]
        %v478 = vld [vmem:[#allocation5 + $0x2e0] sm:$0xff]
        %v479 = vld [vmem:[#allocation5 + $0x2e8] sm:$0xff]
        %v480 = vld [vmem:[#allocation5 + $0x2f0] sm:$0xff]
        %v481 = vld [vmem:[#allocation5 + $0x2f8] sm:$0xff]
        %v482 = vld [vmem:[#allocation5 + $0x300] sm:$0xff]
        %v483 = vld [vmem:[#allocation5 + $0x308] sm:$0xff]
        %v484 = vld [vmem:[#allocation5 + $0x310] sm:$0xff]
        %v485 = vld [vmem:[#allocation5 + $0x318] sm:$0xff]
        %v486 = vld [vmem:[#allocation5 + $0x320] sm:$0xff]
        %v487 = vld [vmem:[#allocation5 + $0x328] sm:$0xff]
        %v488 = vld [vmem:[#allocation5 + $0x330] sm:$0xff]
        %v489 = vld [vmem:[#allocation5 + $0x338] sm:$0xff]
        %v490 = vld [vmem:[#allocation5 + $0x340] sm:$0xff]
        %v491 = vld [vmem:[#allocation5 + $0x348] sm:$0xff]
        %v492 = vld [vmem:[#allocation5 + $0x350] sm:$0xff]
        %v493 = vld [vmem:[#allocation5 + $0x358] sm:$0xff]
        %v494 = vld [vmem:[#allocation5 + $0x360] sm:$0xff]
        %v495 = vld [vmem:[#allocation5 + $0x368] sm:$0xff]
        %v496 = vld [vmem:[#allocation5 + $0x370] sm:$0xff]
        %v497 = vld [vmem:[#allocation5 + $0x378] sm:$0xff]
        %v498 = vld [vmem:[#allocation5 + $0x380] sm:$0xff]
        %v499 = vld [vmem:[#allocation5 + $0x388] sm:$0xff]
        %v500 = vld [vmem:[#allocation5 + $0x390] sm:$0xff]
        %v501 = vld [vmem:[#allocation5 + $0x398] sm:$0xff]
        %v502 = vld [vmem:[#allocation5 + $0x3a0] sm:$0xff]
        %v503 = vld [vmem:[#allocation5 + $0x3a8] sm:$0xff]
        %v504 = vld [vmem:[#allocation5 + $0x3b0] sm:$0xff]
        %v505 = vld [vmem:[#allocation5 + $0x3b8] sm:$0xff]
        %v506 = vld [vmem:[#allocation5 + $0x3c0] sm:$0xff]
        %v507 = vld [vmem:[#allocation5 + $0x3c8] sm:$0xff]
        %v508 = vld [vmem:[#allocation5 + $0x3d0] sm:$0xff]
        %v509 = vld [vmem:[#allocation5 + $0x3d8] sm:$0xff]
        %v510 = vld [vmem:[#allocation5 + $0x3e0] sm:$0xff]
        %v511 = vld [vmem:[#allocation5 + $0x3e8] sm:$0xff]
        %v512 = vld [vmem:[#allocation5 + $0x3f0] sm:$0xff]
        %v513 = vld [vmem:[#allocation5 + $0x3f8] sm:$0xff]
        %v514 = vld [vmem:[#allocation5 + $0x400] sm:$0xff]
        %v515 = vld [vmem:[#allocation5 + $0x408] sm:$0xff]
        %v516 = vld [vmem:[#allocation5 + $0x410] sm:$0xff]
        %v517 = vld [vmem:[#allocation5 + $0x418] sm:$0xff]
        %v518 = vld [vmem:[#allocation5 + $0x420] sm:$0xff]
        %v519 = vld [vmem:[#allocation5 + $0x428] sm:$0xff]
        %v520 = vld [vmem:[#allocation5 + $0x430] sm:$0xff]
        %v521 = vld [vmem:[#allocation5 + $0x438] sm:$0xff]
        %v522 = vld [vmem:[#allocation5 + $0x440] sm:$0xff]
        %v523 = vld [vmem:[#allocation5 + $0x448] sm:$0xff]
        %v524 = vld [vmem:[#allocation5 + $0x450] sm:$0xff]
        %v525 = vld [vmem:[#allocation5 + $0x458] sm:$0xff]
        %v526 = vld [vmem:[#allocation5 + $0x460] sm:$0xff]
        %v527 = vld [vmem:[#allocation5 + $0x468] sm:$0xff]
        %v528 = vld [vmem:[#allocation5 + $0x470] sm:$0xff]
        %v529 = vld [vmem:[#allocation5 + $0x478] sm:$0xff]
        %v530 = vld [vmem:[#allocation5 + $0x480] sm:$0xff]
        %v531 = vld [vmem:[#allocation5 + $0x488] sm:$0xff]
        %v532 = vld [vmem:[#allocation5 + $0x490] sm:$0xff]
        %v533 = vld [vmem:[#allocation5 + $0x498] sm:$0xff]
        %v534 = vld [vmem:[#allocation5 + $0x4a0] sm:$0xff]
        %v535 = vld [vmem:[#allocation5 + $0x4a8] sm:$0xff]
        %v536 = vld [vmem:[#allocation5 + $0x4b0] sm:$0xff]
        %v537 = vld [vmem:[#allocation5 + $0x4b8] sm:$0xff]
        %v538 = vld [vmem:[#allocation5 + $0x4c0] sm:$0xff]
        %v539 = vld [vmem:[#allocation5 + $0x4c8] sm:$0xff]
        %v540 = vld [vmem:[#allocation5 + $0x4d0] sm:$0xff]
        %v541 = vld [vmem:[#allocation5 + $0x4d8] sm:$0xff]
        %v542 = vld [vmem:[#allocation5 + $0x4e0] sm:$0xff]
        %v543 = vld [vmem:[#allocation5 + $0x4e8] sm:$0xff]
        %v544 = vld [vmem:[#allocation5 + $0x4f0] sm:$0xff]
        %v545 = vld [vmem:[#allocation5 + $0x4f8] sm:$0xff]
        %v546 = vld [vmem:[#allocation8] sm:$0xff]
        %v547 = vld [vmem:[#allocation8 + $0x8] sm:$0xff]
        %v548 = vld [vmem:[#allocation8 + $0x10] sm:$0xff]
        %v549 = vld [vmem:[#allocation8 + $0x18] sm:$0xff]
        %v550 = vld [vmem:[#allocation8 + $0x20] sm:$0xff]
        %v551 = vld [vmem:[#allocation8 + $0x28] sm:$0xff]
        %v552 = vld [vmem:[#allocation8 + $0x30] sm:$0xff]
        %v553 = vld [vmem:[#allocation8 + $0x38] sm:$0xff]
        %v554 = vld [vmem:[#allocation8 + $0x40] sm:$0xff]
        %v555 = vld [vmem:[#allocation8 + $0x48] sm:$0xff]
        %v556 = vld [vmem:[#allocation8 + $0x50] sm:$0xff]
        %v557 = vld [vmem:[#allocation8 + $0x58] sm:$0xff]
        %v558 = vld [vmem:[#allocation8 + $0x60] sm:$0xff]
        %v559 = vld [vmem:[#allocation8 + $0x68] sm:$0xff]
        %v560 = vld [vmem:[#allocation8 + $0x70] sm:$0xff]
        %v561 = vld [vmem:[#allocation8 + $0x78] sm:$0xff]
        %v562 = vld [vmem:[#allocation8 + $0x80] sm:$0xff]
        %v563 = vld [vmem:[#allocation8 + $0x88] sm:$0xff]
        %v564 = vld [vmem:[#allocation8 + $0x90] sm:$0xff]
        %v565 = vld [vmem:[#allocation8 + $0x98] sm:$0xff]
        %v566 = vld [vmem:[#allocation8 + $0xa0] sm:$0xff]
        %v567 = vld [vmem:[#allocation8 + $0xa8] sm:$0xff]
        %v568 = vld [vmem:[#allocation8 + $0xb0] sm:$0xff]
        %v569 = vld [vmem:[#allocation8 + $0xb8] sm:$0xff]
        %v570 = vld [vmem:[#allocation8 + $0xc0] sm:$0xff]
        %v571 = vld [vmem:[#allocation8 + $0xc8] sm:$0xff]
        %v572 = vld [vmem:[#allocation8 + $0xd0] sm:$0xff]
        %v573 = vld [vmem:[#allocation8 + $0xd8] sm:$0xff]
        %v574 = vld [vmem:[#allocation8 + $0xe0] sm:$0xff]
        %v575 = vld [vmem:[#allocation8 + $0xe8] sm:$0xff]
        %v576 = vld [vmem:[#allocation8 + $0xf0] sm:$0xff]
        %v577 = vld [vmem:[#allocation8 + $0xf8] sm:$0xff]
        %v578 = vld [vmem:[#allocation8 + $0x100] sm:$0xff]
        %v579 = vld [vmem:[#allocation8 + $0x108] sm:$0xff]
        %v580 = vld [vmem:[#allocation8 + $0x110] sm:$0xff]
        %v581 = vld [vmem:[#allocation8 + $0x118] sm:$0xff]
        %v582 = vld [vmem:[#allocation8 + $0x120] sm:$0xff]
        %v583 = vld [vmem:[#allocation8 + $0x128] sm:$0xff]
        %v584 = vld [vmem:[#allocation8 + $0x130] sm:$0xff]
        %v585 = vld [vmem:[#allocation8 + $0x138] sm:$0xff]
        %v586 = vld [vmem:[#allocation8 + $0x140] sm:$0xff]
        %v587 = vld [vmem:[#allocation8 + $0x148] sm:$0xff]
        %v588 = vld [vmem:[#allocation8 + $0x150] sm:$0xff]
        %v589 = vld [vmem:[#allocation8 + $0x158] sm:$0xff]
        %v590 = vld [vmem:[#allocation8 + $0x160] sm:$0xff]
        %v591 = vld [vmem:[#allocation8 + $0x168] sm:$0xff]
        %v592 = vld [vmem:[#allocation8 + $0x170] sm:$0xff]
        %v593 = vld [vmem:[#allocation8 + $0x178] sm:$0xff]
        %v594 = vld [vmem:[#allocation8 + $0x180] sm:$0xff]
        %v595 = vld [vmem:[#allocation8 + $0x188] sm:$0xff]
        %v596 = vld [vmem:[#allocation8 + $0x190] sm:$0xff]
        %v597 = vld [vmem:[#allocation8 + $0x198] sm:$0xff]
        %v598 = vld [vmem:[#allocation8 + $0x1a0] sm:$0xff]
        %v599 = vld [vmem:[#allocation8 + $0x1a8] sm:$0xff]
        %v600 = vld [vmem:[#allocation8 + $0x1b0] sm:$0xff]
        %v601 = vld [vmem:[#allocation8 + $0x1b8] sm:$0xff]
        %v602 = vld [vmem:[#allocation8 + $0x1c0] sm:$0xff]
        %v603 = vld [vmem:[#allocation8 + $0x1c8] sm:$0xff]
        %v604 = vld [vmem:[#allocation8 + $0x1d0] sm:$0xff]
        %v605 = vld [vmem:[#allocation8 + $0x1d8] sm:$0xff]
        %v606 = vld [vmem:[#allocation8 + $0x1e0] sm:$0xff]
        %v607 = vld [vmem:[#allocation8 + $0x1e8] sm:$0xff]
        %v608 = vld [vmem:[#allocation8 + $0x1f0] sm:$0xff]
        %v609 = vld [vmem:[#allocation8 + $0x1f8] sm:$0xff]
        %v610 = vld [vmem:[#allocation8 + $0x200] sm:$0xff]
        %v611 = vld [vmem:[#allocation8 + $0x208] sm:$0xff]
        %v612 = vld [vmem:[#allocation8 + $0x210] sm:$0xff]
        %v613 = vld [vmem:[#allocation8 + $0x218] sm:$0xff]
        %v614 = vld [vmem:[#allocation8 + $0x220] sm:$0xff]
        %v615 = vld [vmem:[#allocation8 + $0x228] sm:$0xff]
        %v616 = vld [vmem:[#allocation8 + $0x230] sm:$0xff]
        %v617 = vld [vmem:[#allocation8 + $0x238] sm:$0xff]
        %v618 = vld [vmem:[#allocation8 + $0x240] sm:$0xff]
        %v619 = vld [vmem:[#allocation8 + $0x248] sm:$0xff]
        %v620 = vld [vmem:[#allocation8 + $0x250] sm:$0xff]
        %v621 = vld [vmem:[#allocation8 + $0x258] sm:$0xff]
        %v622 = vld [vmem:[#allocation8 + $0x260] sm:$0xff]
        %v623 = vld [vmem:[#allocation8 + $0x268] sm:$0xff]
        %v624 = vld [vmem:[#allocation8 + $0x270] sm:$0xff]
        %v625 = vld [vmem:[#allocation8 + $0x278] sm:$0xff]
        %v626 = vld [vmem:[#allocation8 + $0x280] sm:$0xff]
        %v627 = vld [vmem:[#allocation8 + $0x288] sm:$0xff]
        %v628 = vld [vmem:[#allocation8 + $0x290] sm:$0xff]
        %v629 = vld [vmem:[#allocation8 + $0x298] sm:$0xff]
        %v630 = vld [vmem:[#allocation8 + $0x2a0] sm:$0xff]
        %v631 = vld [vmem:[#allocation8 + $0x2a8] sm:$0xff]
        %v632 = vld [vmem:[#allocation8 + $0x2b0] sm:$0xff]
        %v633 = vld [vmem:[#allocation8 + $0x2b8] sm:$0xff]
        %v634 = vld [vmem:[#allocation8 + $0x2c0] sm:$0xff]
        %v635 = vld [vmem:[#allocation8 + $0x2c8] sm:$0xff]
        %v636 = vld [vmem:[#allocation8 + $0x2d0] sm:$0xff]
        %v637 = vld [vmem:[#allocation8 + $0x2d8] sm:$0xff]
        %v638 = vld [vmem:[#allocation8 + $0x2e0] sm:$0xff]
        %v639 = vld [vmem:[#allocation8 + $0x2e8] sm:$0xff]
        %v640 = vld [vmem:[#allocation8 + $0x2f0] sm:$0xff]
        %v641 = vld [vmem:[#allocation8 + $0x2f8] sm:$0xff]
        %v642 = vld [vmem:[#allocation8 + $0x300] sm:$0xff]
        %v643 = vld [vmem:[#allocation8 + $0x308] sm:$0xff]
        %v644 = vld [vmem:[#allocation8 + $0x310] sm:$0xff]
        %v645 = vld [vmem:[#allocation8 + $0x318] sm:$0xff]
        %v646 = vld [vmem:[#allocation8 + $0x320] sm:$0xff]
        %v647 = vld [vmem:[#allocation8 + $0x328] sm:$0xff]
        %v648 = vld [vmem:[#allocation8 + $0x330] sm:$0xff]
        %v649 = vld [vmem:[#allocation8 + $0x338] sm:$0xff]
        %v650 = vld [vmem:[#allocation8 + $0x340] sm:$0xff]
        %v651 = vld [vmem:[#allocation8 + $0x348] sm:$0xff]
        %v652 = vld [vmem:[#allocation8 + $0x350] sm:$0xff]
        %v653 = vld [vmem:[#allocation8 + $0x358] sm:$0xff]
        %v654 = vld [vmem:[#allocation8 + $0x360] sm:$0xff]
        %v655 = vld [vmem:[#allocation8 + $0x368] sm:$0xff]
        %v656 = vld [vmem:[#allocation8 + $0x370] sm:$0xff]
        %v657 = vld [vmem:[#allocation8 + $0x378] sm:$0xff]
        %v658 = vld [vmem:[#allocation8 + $0x380] sm:$0xff]
        %v659 = vld [vmem:[#allocation8 + $0x388] sm:$0xff]
        %v660 = vld [vmem:[#allocation8 + $0x390] sm:$0xff]
        %v661 = vld [vmem:[#allocation8 + $0x398] sm:$0xff]
        %v662 = vld [vmem:[#allocation8 + $0x3a0] sm:$0xff]
        %v663 = vld [vmem:[#allocation8 + $0x3a8] sm:$0xff]
        %v664 = vld [vmem:[#allocation8 + $0x3b0] sm:$0xff]
        %v665 = vld [vmem:[#allocation8 + $0x3b8] sm:$0xff]
        %v666 = vld [vmem:[#allocation8 + $0x3c0] sm:$0xff]
        %v667 = vld [vmem:[#allocation8 + $0x3c8] sm:$0xff]
        %v668 = vld [vmem:[#allocation8 + $0x3d0] sm:$0xff]
        %v669 = vld [vmem:[#allocation8 + $0x3d8] sm:$0xff]
        %v670 = vld [vmem:[#allocation8 + $0x3e0] sm:$0xff]
        %v671 = vld [vmem:[#allocation8 + $0x3e8] sm:$0xff]
        %v672 = vld [vmem:[#allocation8 + $0x3f0] sm:$0xff]
        %v673 = vld [vmem:[#allocation8 + $0x3f8] sm:$0xff]
        %v674 = vld [vmem:[#allocation8 + $0x400] sm:$0xff]
        %v675 = vld [vmem:[#allocation8 + $0x408] sm:$0xff]
        %v676 = vld [vmem:[#allocation8 + $0x410] sm:$0xff]
        %v677 = vld [vmem:[#allocation8 + $0x418] sm:$0xff]
        %v678 = vld [vmem:[#allocation8 + $0x420] sm:$0xff]
        %v679 = vld [vmem:[#allocation8 + $0x428] sm:$0xff]
        %v680 = vld [vmem:[#allocation8 + $0x430] sm:$0xff]
        %v681 = vld [vmem:[#allocation8 + $0x438] sm:$0xff]
        %v682 = vld [vmem:[#allocation8 + $0x440] sm:$0xff]
        %v683 = vld [vmem:[#allocation8 + $0x448] sm:$0xff]
        %v684 = vld [vmem:[#allocation8 + $0x450] sm:$0xff]
        %v685 = vld [vmem:[#allocation8 + $0x458] sm:$0xff]
        %v686 = vld [vmem:[#allocation8 + $0x460] sm:$0xff]
        %v687 = vld [vmem:[#allocation8 + $0x468] sm:$0xff]
        %v688 = vld [vmem:[#allocation8 + $0x470] sm:$0xff]
        %v689 = vld [vmem:[#allocation8 + $0x478] sm:$0xff]
        %v690 = vld [vmem:[#allocation8 + $0x480] sm:$0xff]
        %v691 = vld [vmem:[#allocation8 + $0x488] sm:$0xff]
        %v692 = vld [vmem:[#allocation8 + $0x490] sm:$0xff]
        %v693 = vld [vmem:[#allocation8 + $0x498] sm:$0xff]
        %v694 = vld [vmem:[#allocation8 + $0x4a0] sm:$0xff]
        %v695 = vld [vmem:[#allocation8 + $0x4a8] sm:$0xff]
        %v696 = vld [vmem:[#allocation8 + $0x4b0] sm:$0xff]
        %v697 = vld [vmem:[#allocation8 + $0x4b8] sm:$0xff]
        %v698 = vld [vmem:[#allocation8 + $0x4c0] sm:$0xff]
        %v699 = vld [vmem:[#allocation8 + $0x4c8] sm:$0xff]
        %v700 = vld [vmem:[#allocation8 + $0x4d0] sm:$0xff]
        %v701 = vld [vmem:[#allocation8 + $0x4d8] sm:$0xff]
        %v702 = vld [vmem:[#allocation8 + $0x4e0] sm:$0xff]
        %v703 = vld [vmem:[#allocation8 + $0x4e8] sm:$0xff]
        %v704 = vld [vmem:[#allocation8 + $0x4f0] sm:$0xff]
        %v705 = vld [vmem:[#allocation8 + $0x4f8] sm:$0xff]
        %v706 = vld [vmem:[%s365] sm:$0xff]
        %v707 = vld [vmem:[%s365 + $0x8] sm:$0xff]
        %v708 = vld [vmem:[%s365 + $0x10] sm:$0xff]
        %v709 = vld [vmem:[%s365 + $0x18] sm:$0xff]
        %v710 = vld [vmem:[%s365 + $0x20] sm:$0x1]
        %v711 = vld [vmem:[%s365 + $0x28] sm:$0x1]
        %vm718 = vcmask 1046528
        %v719 = vrot.slane %v706, 1
        %v720 = vrot.slane %v708, 1
        %v721 = vsel %vm718, %v719, %v720
        %v722 = vrot.slane %v707, 1
        %v723 = vrot.slane %v709, 1
        %v724 = vsel %vm718, %v722, %v723
        %v725 = vrot.slane %v710, 1
        %v726 = vsel %vm718, %v720, %v725
        %v727 = vrot.slane %v711, 1
        %v728 = vsel %vm718, %v723, %v727
        %733 = vmatprep.subr.mxu0 %v547
        %734 = vmatpush1.msra.mxu0 %v546
        %735 = vmatprep.subr.mxu0 %v552
        %736 = vmatpush1.msra.mxu0 %v551
        %737 = vmatprep.subr.mxu0 %v557
        %738 = vmatpush1.msra.mxu0 %v556
        %739 = vmatprep.subr.mxu0 %v562
        %740 = vmatpush1.msra.mxu0 %v561
        %741 = vmatprep.subr.mxu0 %v567
        %742 = vmatpush1.msra.mxu0 %v566
        %743 = vmatprep.subr.mxu0 %v572
        %744 = vmatpush1.msra.mxu0 %v571
        %745 = vmatprep.subr.mxu0 %v577
        %746 = vmatpush1.msra.mxu0 %v576
        %747 = vmatprep.subr.mxu0 %v582
        %748 = vmatpush1.msra.mxu0 %v581
        %749 = vmatprep.subr.mxu0 %v587
        %750 = vmatpush1.msra.mxu0 %v586
        %751 = vmatprep.subr.mxu0 %v592
        %752 = vmatpush1.msra.mxu0 %v591
        %753 = vmatprep.subr.mxu0 %v597
        %754 = vmatpush1.msra.mxu0 %v596
        %755 = vmatprep.subr.mxu0 %v602
        %756 = vmatpush1.msra.mxu0 %v601
        %757 = vmatprep.subr.mxu0 %v607
        %758 = vmatpush1.msra.mxu0 %v606
        %759 = vmatprep.subr.mxu0 %v612
        %760 = vmatpush1.msra.mxu0 %v611
        %761 = vmatprep.subr.mxu0 %v617
        %762 = vmatpush1.msra.mxu0 %v616
        %763 = vmatprep.subr.mxu0 %v622
        %764 = vmatpush1.msra.mxu0 %v621
        %765 = vmatprep.subr.mxu0 %v627
        %766 = vmatpush1.msra.mxu0 %v626
        %767 = vmatprep.subr.mxu0 %v632
        %768 = vmatpush1.msra.mxu0 %v631
        %769 = vmatprep.subr.mxu0 %v637
        %770 = vmatpush1.msra.mxu0 %v636
        %771 = vmatprep.subr.mxu0 %v642
        %772 = vmatpush1.msra.mxu0 %v641
        %773 = vmatprep.subr.mxu0 %v647
        %774 = vmatpush1.msra.mxu0 %v646
        %775 = vmatprep.subr.mxu0 %v652
        %776 = vmatpush1.msra.mxu0 %v651
        %777 = vmatprep.subr.mxu0 %v657
        %778 = vmatpush1.msra.mxu0 %v656
        %779 = vmatprep.subr.mxu0 %v662
        %780 = vmatpush1.msra.mxu0 %v661
        %781 = vmatprep.subr.mxu0 %v667
        %782 = vmatpush1.msra.mxu0 %v666
        %783 = vmatprep.subr.mxu0 %v672
        %784 = vmatpush1.msra.mxu0 %v671
        %785 = vmatprep.subr.mxu0 %v677
        %786 = vmatpush1.msra.mxu0 %v676
        %787 = vmatprep.subr.mxu0 %v682
        %788 = vmatpush1.msra.mxu0 %v681
        %789 = vmatprep.subr.mxu0 %v687
        %790 = vmatpush1.msra.mxu0 %v686
        %791 = vmatprep.subr.mxu0 %v692
        %792 = vmatpush1.msra.mxu0 %v691
        %793 = vmatprep.subr.mxu0 %v697
        %794 = vmatpush1.msra.mxu0 %v696
        %795 = vmatprep.subr.mxu0 %v702
        %796 = vmatpush1.msra.mxu0 %v701
        %797 = vmatprep.mubr.f32.mxu0 %v724
        %798 = vmatmul.mubr.f32.gmra.mrb[0].mxu0 %v721
        %v799 = vpop.f32.mrb[0].mxu0
        %v800 = vadd.f32 0.0, %v799
        %v801 = vpop.f32.mrb[0].mxu0
        %v802 = vadd.f32 0.0, %v801
        %803 = vmatprep.mubr.f32.mxu0 %v728
        %804 = vmatmul.mubr.f32.gmra.mrb[0].mxu0 %v726
        %v805 = vpop.f32.mrb[0].mxu0
        %v806 = vadd.f32 0.0, %v805
        %v807 = vpop.f32.mrb[0].mxu0
        %v808 = vadd.f32 0.0, %v807
        %809 = vdwg.mxu0
        %810 = vmatprep.subr.mxu0 %v549
        %811 = vmatpush1.msra.mxu0 %v548
        %812 = vmatprep.subr.mxu0 %v554
        %813 = vmatpush1.msra.mxu0 %v553
        %814 = vmatprep.subr.mxu0 %v559
        %815 = vmatpush1.msra.mxu0 %v558
        %816 = vmatprep.subr.mxu0 %v564
        %817 = vmatpush1.msra.mxu0 %v563
        %818 = vmatprep.subr.mxu0 %v569
        %819 = vmatpush1.msra.mxu0 %v568
        %820 = vmatprep.subr.mxu0 %v574
        %821 = vmatpush1.msra.mxu0 %v573
        %822 = vmatprep.subr.mxu0 %v579
        %823 = vmatpush1.msra.mxu0 %v578
        %824 = vmatprep.subr.mxu0 %v584
        %825 = vmatpush1.msra.mxu0 %v583
        %826 = vmatprep.subr.mxu0 %v589
        %827 = vmatpush1.msra.mxu0 %v588
        %828 = vmatprep.subr.mxu0 %v594
        %829 = vmatpush1.msra.mxu0 %v593
        %830 = vmatprep.subr.mxu0 %v599
        %831 = vmatpush1.msra.mxu0 %v598
        %832 = vmatprep.subr.mxu0 %v604
        %833 = vmatpush1.msra.mxu0 %v603
        %834 = vmatprep.subr.mxu0 %v609
        %835 = vmatpush1.msra.mxu0 %v608
        %836 = vmatprep.subr.mxu0 %v614
        %837 = vmatpush1.msra.mxu0 %v613
        %838 = vmatprep.subr.mxu0 %v619
        %839 = vmatpush1.msra.mxu0 %v618
        %840 = vmatprep.subr.mxu0 %v624
        %841 = vmatpush1.msra.mxu0 %v623
        %842 = vmatprep.subr.mxu0 %v629
        %843 = vmatpush1.msra.mxu0 %v628
        %844 = vmatprep.subr.mxu0 %v634
        %845 = vmatpush1.msra.mxu0 %v633
        %846 = vmatprep.subr.mxu0 %v639
        %847 = vmatpush1.msra.mxu0 %v638
        %848 = vmatprep.subr.mxu0 %v644
        %849 = vmatpush1.msra.mxu0 %v643
        %850 = vmatprep.subr.mxu0 %v649
        %851 = vmatpush1.msra.mxu0 %v648
        %852 = vmatprep.subr.mxu0 %v654
        %853 = vmatpush1.msra.mxu0 %v653
        %854 = vmatprep.subr.mxu0 %v659
        %855 = vmatpush1.msra.mxu0 %v658
        %856 = vmatprep.subr.mxu0 %v664
        %857 = vmatpush1.msra.mxu0 %v663
        %858 = vmatprep.subr.mxu0 %v669
        %859 = vmatpush1.msra.mxu0 %v668
        %860 = vmatprep.subr.mxu0 %v674
        %861 = vmatpush1.msra.mxu0 %v673
        %862 = vmatprep.subr.mxu0 %v679
        %863 = vmatpush1.msra.mxu0 %v678
        %864 = vmatprep.subr.mxu0 %v684
        %865 = vmatpush1.msra.mxu0 %v683
        %866 = vmatprep.subr.mxu0 %v689
        %867 = vmatpush1.msra.mxu0 %v688
        %868 = vmatprep.subr.mxu0 %v694
        %869 = vmatpush1.msra.mxu0 %v693
        %870 = vmatprep.subr.mxu0 %v699
        %871 = vmatpush1.msra.mxu0 %v698
        %872 = vmatprep.subr.mxu0 %v704
        %873 = vmatpush1.msra.mxu0 %v703
        %874 = vmatprep.mubr.f32.mxu0 %v724
        %875 = vmatmul.mubr.f32.gmra.mrb[0].mxu0 %v721
        %v876 = vpop.f32.mrb[0].mxu0
        %v877 = vadd.f32 0.0, %v876
        %v878 = vpop.f32.mrb[0].mxu0
        %v879 = vadd.f32 0.0, %v878
        %880 = vmatprep.mubr.f32.mxu0 %v728
        %881 = vmatmul.mubr.f32.gmra.mrb[0].mxu0 %v726
        %v882 = vpop.f32.mrb[0].mxu0
        %v883 = vadd.f32 0.0, %v882
        %v884 = vpop.f32.mrb[0].mxu0
        %v885 = vadd.f32 0.0, %v884
        %886 = vdwg.mxu0
        %887 = vmatprep.subr.mxu0 0.0
        %888 = vmatpush1.msra.mxu0 %v550
        %889 = vmatprep.subr.mxu0 0.0
        %890 = vmatpush1.msra.mxu0 %v555
        %891 = vmatprep.subr.mxu0 0.0
        %892 = vmatpush1.msra.mxu0 %v560
        %893 = vmatprep.subr.mxu0 0.0
        %894 = vmatpush1.msra.mxu0 %v565
        %895 = vmatprep.subr.mxu0 0.0
        %896 = vmatpush1.msra.mxu0 %v570
        %897 = vmatprep.subr.mxu0 0.0
        %898 = vmatpush1.msra.mxu0 %v575
        %899 = vmatprep.subr.mxu0 0.0
        %900 = vmatpush1.msra.mxu0 %v580
        %901 = vmatprep.subr.mxu0 0.0
        %902 = vmatpush1.msra.mxu0 %v585
        %903 = vmatprep.subr.mxu0 0.0
        %904 = vmatpush1.msra.mxu0 %v590
        %905 = vmatprep.subr.mxu0 0.0
        %906 = vmatpush1.msra.mxu0 %v595
        %907 = vmatprep.subr.mxu0 0.0
        %908 = vmatpush1.msra.mxu0 %v600
        %909 = vmatprep.subr.mxu0 0.0
        %910 = vmatpush1.msra.mxu0 %v605
        %911 = vmatprep.subr.mxu0 0.0
        %912 = vmatpush1.msra.mxu0 %v610
        %913 = vmatprep.subr.mxu0 0.0
        %914 = vmatpush1.msra.mxu0 %v615
        %915 = vmatprep.subr.mxu0 0.0
        %916 = vmatpush1.msra.mxu0 %v620
        %917 = vmatprep.subr.mxu0 0.0
        %918 = vmatpush1.msra.mxu0 %v625
        %919 = vmatprep.subr.mxu0 0.0
        %920 = vmatpush1.msra.mxu0 %v630
        %921 = vmatprep.subr.mxu0 0.0
        %922 = vmatpush1.msra.mxu0 %v635
        %923 = vmatprep.subr.mxu0 0.0
        %924 = vmatpush1.msra.mxu0 %v640
        %925 = vmatprep.subr.mxu0 0.0
        %926 = vmatpush1.msra.mxu0 %v645
        %927 = vmatprep.subr.mxu0 0.0
        %928 = vmatpush1.msra.mxu0 %v650
        %929 = vmatprep.subr.mxu0 0.0
        %930 = vmatpush1.msra.mxu0 %v655
        %931 = vmatprep.subr.mxu0 0.0
        %932 = vmatpush1.msra.mxu0 %v660
        %933 = vmatprep.subr.mxu0 0.0
        %934 = vmatpush1.msra.mxu0 %v665
        %935 = vmatprep.subr.mxu0 0.0
        %936 = vmatpush1.msra.mxu0 %v670
        %937 = vmatprep.subr.mxu0 0.0
        %938 = vmatpush1.msra.mxu0 %v675
        %939 = vmatprep.subr.mxu0 0.0
        %940 = vmatpush1.msra.mxu0 %v680
        %941 = vmatprep.subr.mxu0 0.0
        %942 = vmatpush1.msra.mxu0 %v685
        %943 = vmatprep.subr.mxu0 0.0
        %944 = vmatpush1.msra.mxu0 %v690
        %945 = vmatprep.subr.mxu0 0.0
        %946 = vmatpush1.msra.mxu0 %v695
        %947 = vmatprep.subr.mxu0 0.0
        %948 = vmatpush1.msra.mxu0 %v700
        %949 = vmatprep.subr.mxu0 0.0
        %950 = vmatpush1.msra.mxu0 %v705
        %951 = vmatprep.mubr.f32.mxu0 %v724
        %952 = vmatmul.mubr.f32.gmra.mrb[0].mxu0 %v721
        %v953 = vpop.f32.mrb[0].mxu0
        %v954 = vadd.f32 0.0, %v953
        %v955 = vpop.f32.mrb[0].mxu0
        %956 = vmatprep.mubr.f32.mxu0 %v728
        %957 = vmatmul.mubr.f32.gmra.mrb[0].mxu0 %v726
        %v958 = vpop.f32.mrb[0].mxu0
        %v959 = vadd.f32 0.0, %v958
        %v960 = vpop.f32.mrb[0].mxu0
        %961 = vdwg.mxu0
        %962 = vmatprep.subr.mxu0 %v387
        %963 = vmatpush1.msra.mxu0 %v386
        %964 = vmatprep.subr.mxu0 %v392
        %965 = vmatpush1.msra.mxu0 %v391
        %966 = vmatprep.subr.mxu0 %v397
        %967 = vmatpush1.msra.mxu0 %v396
        %968 = vmatprep.subr.mxu0 %v402
        %969 = vmatpush1.msra.mxu0 %v401
        %970 = vmatprep.subr.mxu0 %v407
        %971 = vmatpush1.msra.mxu0 %v406
        %972 = vmatprep.subr.mxu0 %v412
        %973 = vmatpush1.msra.mxu0 %v411
        %974 = vmatprep.subr.mxu0 %v417
        %975 = vmatpush1.msra.mxu0 %v416
        %976 = vmatprep.subr.mxu0 %v422
        %977 = vmatpush1.msra.mxu0 %v421
        %978 = vmatprep.subr.mxu0 %v427
        %979 = vmatpush1.msra.mxu0 %v426
        %980 = vmatprep.subr.mxu0 %v432
        %981 = vmatpush1.msra.mxu0 %v431
        %982 = vmatprep.subr.mxu0 %v437
        %983 = vmatpush1.msra.mxu0 %v436
        %984 = vmatprep.subr.mxu0 %v442
        %985 = vmatpush1.msra.mxu0 %v441
        %986 = vmatprep.subr.mxu0 %v447
        %987 = vmatpush1.msra.mxu0 %v446
        %988 = vmatprep.subr.mxu0 %v452
        %989 = vmatpush1.msra.mxu0 %v451
        %990 = vmatprep.subr.mxu0 %v457
        %991 = vmatpush1.msra.mxu0 %v456
        %992 = vmatprep.subr.mxu0 %v462
        %993 = vmatpush1.msra.mxu0 %v461
        %994 = vmatprep.subr.mxu0 %v467
        %995 = vmatpush1.msra.mxu0 %v466
        %996 = vmatprep.subr.mxu0 %v472
        %997 = vmatpush1.msra.mxu0 %v471
        %998 = vmatprep.subr.mxu0 %v477
        %999 = vmatpush1.msra.mxu0 %v476
        %1000 = vmatprep.subr.mxu0 %v482
        %1001 = vmatpush1.msra.mxu0 %v481
        %1002 = vmatprep.subr.mxu0 %v487
        %1003 = vmatpush1.msra.mxu0 %v486
        %1004 = vmatprep.subr.mxu0 %v492
        %1005 = vmatpush1.msra.mxu0 %v491
        %1006 = vmatprep.subr.mxu0 %v497
        %1007 = vmatpush1.msra.mxu0 %v496
        %1008 = vmatprep.subr.mxu0 %v502
        %1009 = vmatpush1.msra.mxu0 %v501
        %1010 = vmatprep.subr.mxu0 %v507
        %1011 = vmatpush1.msra.mxu0 %v506
        %1012 = vmatprep.subr.mxu0 %v512
        %1013 = vmatpush1.msra.mxu0 %v511
        %1014 = vmatprep.subr.mxu0 %v517
        %1015 = vmatpush1.msra.mxu0 %v516
        %1016 = vmatprep.subr.mxu0 %v522
        %1017 = vmatpush1.msra.mxu0 %v521
        %1018 = vmatprep.subr.mxu0 %v527
        %1019 = vmatpush1.msra.mxu0 %v526
        %1020 = vmatprep.subr.mxu0 %v532
        %1021 = vmatpush1.msra.mxu0 %v531
        %1022 = vmatprep.subr.mxu0 %v537
        %1023 = vmatpush1.msra.mxu0 %v536
        %1024 = vmatprep.subr.mxu0 %v542
        %1025 = vmatpush1.msra.mxu0 %v541
        %1026 = vmatprep.mubr.f32.mxu0 %v707
        %1027 = vmatmul.mubr.f32.gmra.mrb[0].mxu0 %v706
        %v1028 = vpop.f32.mrb[0].mxu0
        %v1029 = vadd.f32 %v800, %v1028
        %v1030 = vpop.f32.mrb[0].mxu0
        %v1031 = vadd.f32 %v802, %v1030
        %1032 = vmatprep.mubr.f32.mxu0 %v709
        %1033 = vmatmul.mubr.f32.gmra.mrb[0].mxu0 %v708
        %v1034 = vpop.f32.mrb[0].mxu0
        %v1035 = vadd.f32 %v806, %v1034
        %v1036 = vpop.f32.mrb[0].mxu0
        %v1037 = vadd.f32 %v808, %v1036
        %1038 = vdwg.mxu0
        %1039 = vmatprep.subr.mxu0 %v389
        %1040 = vmatpush1.msra.mxu0 %v388
        %1041 = vmatprep.subr.mxu0 %v394
        %1042 = vmatpush1.msra.mxu0 %v393
        %1043 = vmatprep.subr.mxu0 %v399
        %1044 = vmatpush1.msra.mxu0 %v398
        %1045 = vmatprep.subr.mxu0 %v404
        %1046 = vmatpush1.msra.mxu0 %v403
        %1047 = vmatprep.subr.mxu0 %v409
        %1048 = vmatpush1.msra.mxu0 %v408
        %1049 = vmatprep.subr.mxu0 %v414
        %1050 = vmatpush1.msra.mxu0 %v413
        %1051 = vmatprep.subr.mxu0 %v419
        %1052 = vmatpush1.msra.mxu0 %v418
        %1053 = vmatprep.subr.mxu0 %v424
        %1054 = vmatpush1.msra.mxu0 %v423
        %1055 = vmatprep.subr.mxu0 %v429
        %1056 = vmatpush1.msra.mxu0 %v428
        %1057 = vmatprep.subr.mxu0 %v434
        %1058 = vmatpush1.msra.mxu0 %v433
        %1059 = vmatprep.subr.mxu0 %v439
        %1060 = vmatpush1.msra.mxu0 %v438
        %1061 = vmatprep.subr.mxu0 %v444
        %1062 = vmatpush1.msra.mxu0 %v443
        %1063 = vmatprep.subr.mxu0 %v449
        %1064 = vmatpush1.msra.mxu0 %v448
        %1065 = vmatprep.subr.mxu0 %v454
        %1066 = vmatpush1.msra.mxu0 %v453
        %1067 = vmatprep.subr.mxu0 %v459
        %1068 = vmatpush1.msra.mxu0 %v458
        %1069 = vmatprep.subr.mxu0 %v464
        %1070 = vmatpush1.msra.mxu0 %v463
        %1071 = vmatprep.subr.mxu0 %v469
        %1072 = vmatpush1.msra.mxu0 %v468
        %1073 = vmatprep.subr.mxu0 %v474
        %1074 = vmatpush1.msra.mxu0 %v473
        %1075 = vmatprep.subr.mxu0 %v479
        %1076 = vmatpush1.msra.mxu0 %v478
        %1077 = vmatprep.subr.mxu0 %v484
        %1078 = vmatpush1.msra.mxu0 %v483
        %1079 = vmatprep.subr.mxu0 %v489
        %1080 = vmatpush1.msra.mxu0 %v488
        %1081 = vmatprep.subr.mxu0 %v494
        %1082 = vmatpush1.msra.mxu0 %v493
        %1083 = vmatprep.subr.mxu0 %v499
        %1084 = vmatpush1.msra.mxu0 %v498
        %1085 = vmatprep.subr.mxu0 %v504
        %1086 = vmatpush1.msra.mxu0 %v503
        %1087 = vmatprep.subr.mxu0 %v509
        %1088 = vmatpush1.msra.mxu0 %v508
        %1089 = vmatprep.subr.mxu0 %v514
        %1090 = vmatpush1.msra.mxu0 %v513
        %1091 = vmatprep.subr.mxu0 %v519
        %1092 = vmatpush1.msra.mxu0 %v518
        %1093 = vmatprep.subr.mxu0 %v524
        %1094 = vmatpush1.msra.mxu0 %v523
        %1095 = vmatprep.subr.mxu0 %v529
        %1096 = vmatpush1.msra.mxu0 %v528
        %1097 = vmatprep.subr.mxu0 %v534
        %1098 = vmatpush1.msra.mxu0 %v533
        %1099 = vmatprep.subr.mxu0 %v539
        %1100 = vmatpush1.msra.mxu0 %v538
        %1101 = vmatprep.subr.mxu0 %v544
        %1102 = vmatpush1.msra.mxu0 %v543
        %1103 = vmatprep.mubr.f32.mxu0 %v707
        %1104 = vmatmul.mubr.f32.gmra.mrb[0].mxu0 %v706
        %v1105 = vpop.f32.mrb[0].mxu0
        %v1106 = vadd.f32 %v877, %v1105
        %v1107 = vpop.f32.mrb[0].mxu0
        %v1108 = vadd.f32 %v879, %v1107
        %1109 = vmatprep.mubr.f32.mxu0 %v709
        %1110 = vmatmul.mubr.f32.gmra.mrb[0].mxu0 %v708
        %v1111 = vpop.f32.mrb[0].mxu0
        %v1112 = vadd.f32 %v883, %v1111
        %v1113 = vpop.f32.mrb[0].mxu0
        %v1114 = vadd.f32 %v885, %v1113
        %1115 = vdwg.mxu0
        %1116 = vmatprep.subr.mxu0 0.0
        %1117 = vmatpush1.msra.mxu0 %v390
        %1118 = vmatprep.subr.mxu0 0.0
        %1119 = vmatpush1.msra.mxu0 %v395
        %1120 = vmatprep.subr.mxu0 0.0
        %1121 = vmatpush1.msra.mxu0 %v400
        %1122 = vmatprep.subr.mxu0 0.0
        %1123 = vmatpush1.msra.mxu0 %v405
        %1124 = vmatprep.subr.mxu0 0.0
        %1125 = vmatpush1.msra.mxu0 %v410
        %1126 = vmatprep.subr.mxu0 0.0
        %1127 = vmatpush1.msra.mxu0 %v415
        %1128 = vmatprep.subr.mxu0 0.0
        %1129 = vmatpush1.msra.mxu0 %v420
        %1130 = vmatprep.subr.mxu0 0.0
        %1131 = vmatpush1.msra.mxu0 %v425
        %1132 = vmatprep.subr.mxu0 0.0
        %1133 = vmatpush1.msra.mxu0 %v430
        %1134 = vmatprep.subr.mxu0 0.0
        %1135 = vmatpush1.msra.mxu0 %v435
        %1136 = vmatprep.subr.mxu0 0.0
        %1137 = vmatpush1.msra.mxu0 %v440
        %1138 = vmatprep.subr.mxu0 0.0
        %1139 = vmatpush1.msra.mxu0 %v445
        %1140 = vmatprep.subr.mxu0 0.0
        %1141 = vmatpush1.msra.mxu0 %v450
        %1142 = vmatprep.subr.mxu0 0.0
        %1143 = vmatpush1.msra.mxu0 %v455
        %1144 = vmatprep.subr.mxu0 0.0
        %1145 = vmatpush1.msra.mxu0 %v460
        %1146 = vmatprep.subr.mxu0 0.0
        %1147 = vmatpush1.msra.mxu0 %v465
        %1148 = vmatprep.subr.mxu0 0.0
        %1149 = vmatpush1.msra.mxu0 %v470
        %1150 = vmatprep.subr.mxu0 0.0
        %1151 = vmatpush1.msra.mxu0 %v475
        %1152 = vmatprep.subr.mxu0 0.0
        %1153 = vmatpush1.msra.mxu0 %v480
        %1154 = vmatprep.subr.mxu0 0.0
        %1155 = vmatpush1.msra.mxu0 %v485
        %1156 = vmatprep.subr.mxu0 0.0
        %1157 = vmatpush1.msra.mxu0 %v490
        %1158 = vmatprep.subr.mxu0 0.0
        %1159 = vmatpush1.msra.mxu0 %v495
        %1160 = vmatprep.subr.mxu0 0.0
        %1161 = vmatpush1.msra.mxu0 %v500
        %1162 = vmatprep.subr.mxu0 0.0
        %1163 = vmatpush1.msra.mxu0 %v505
        %1164 = vmatprep.subr.mxu0 0.0
        %1165 = vmatpush1.msra.mxu0 %v510
        %1166 = vmatprep.subr.mxu0 0.0
        %1167 = vmatpush1.msra.mxu0 %v515
        %1168 = vmatprep.subr.mxu0 0.0
        %1169 = vmatpush1.msra.mxu0 %v520
        %1170 = vmatprep.subr.mxu0 0.0
        %1171 = vmatpush1.msra.mxu0 %v525
        %1172 = vmatprep.subr.mxu0 0.0
        %1173 = vmatpush1.msra.mxu0 %v530
        %1174 = vmatprep.subr.mxu0 0.0
        %1175 = vmatpush1.msra.mxu0 %v535
        %1176 = vmatprep.subr.mxu0 0.0
        %1177 = vmatpush1.msra.mxu0 %v540
        %1178 = vmatprep.subr.mxu0 0.0
        %1179 = vmatpush1.msra.mxu0 %v545
        %1180 = vmatprep.mubr.f32.mxu0 %v707
        %1181 = vmatmul.mubr.f32.gmra.mrb[0].mxu0 %v706
        %v1182 = vpop.f32.mrb[0].mxu0
        %v1183 = vadd.f32 %v954, %v1182
        %v1184 = vpop.f32.mrb[0].mxu0
        %1185 = vmatprep.mubr.f32.mxu0 %v709
        %1186 = vmatmul.mubr.f32.gmra.mrb[0].mxu0 %v708
        %v1187 = vpop.f32.mrb[0].mxu0
        %v1188 = vadd.f32 %v959, %v1187
        %v1189 = vpop.f32.mrb[0].mxu0
        %1190 = vdwg.mxu0
        %v1191 = vmul.f32 %v1029, %v1029
        %v1192 = vmul.f32 %v1031, %v1031
        %v1193 = vmul.f32 %v1035, %v1035
        %v1194 = vmul.f32 %v1037, %v1037
        %v1195 = vmul.f32 %v1106, %v1106
        %v1196 = vmul.f32 %v1108, %v1108
        %v1197 = vmul.f32 %v1112, %v1112
        %v1198 = vmul.f32 %v1114, %v1114
        %v1199 = vadd.f32 %v1191, %v1195
        %v1200 = vadd.f32 %v1192, %v1196
        %v1201 = vadd.f32 %v1193, %v1197
        %v1202 = vadd.f32 %v1194, %v1198
        %v1203 = vmax.f32 %v1199, 1e-10
        %v1204 = vmax.f32 %v1200, 1e-10
        %v1205 = vmax.f32 %v1201, 1e-10
        %v1206 = vmax.f32 %v1202, 1e-10
        %v1207 = vlog2.pop %v1203
        %v1208 = vmul.f32 %v1207, 0.6931472
        %v1209 = vlog2.pop %v1204
        %v1210 = vmul.f32 %v1209, 0.6931472
        %v1211 = vlog2.pop %v1205
        %v1212 = vmul.f32 %v1211, 0.6931472
        %v1213 = vlog2.pop %v1206
        %v1214 = vmul.f32 %v1213, 0.6931472
        %1216 = vset.pattern.permute.xlu0 0
        %1217 = vperm.xlu0 %1216, %v383
        %v1218 = vpop.permute.xlu0 %1217
        %1221 = vset.pattern.permute.xlu0 0
        %1222 = vperm.xlu0 %1221, %v384
        %v1223 = vpop.permute.xlu0 %1222
        %v1225 = vmul.f32 %v1208, %v1218
        %v1226 = vmul.f32 %v1210, %v1218
        %v1227 = vmul.f32 %v1212, %v1223
        %v1228 = vmul.f32 %v1214, %v1223
        %v1229 = vmul.f32 %v1183, %v1183
        %v1230 = vmul.f32 %v1188, %v1188
        %v1231 = vmax.f32 %v1229, 1e-10
        %v1232 = vmax.f32 %v1230, 1e-10
        %v1233 = vlog2.pop %v1231
        %v1234 = vmul.f32 %v1233, 0.6931472
        %v1235 = vlog2.pop %v1232
        %v1236 = vmul.f32 %v1235, 0.6931472
        %v1238 = vlaneseq
        %v1239 = vshrl.u32 %v1238, 7
        %v1240 = vsub.s32 0, %v1239
        %v1241 = vrot.slane %v385, %v1240
        %v1243 = vmul.f32 %v1218, %v1241
        %v1244 = vmul.f32 %v1223, %v1241
        %v1245 = vmul.f32 %v1234, %v1243
        %v1246 = vmul.f32 %v1236, %v1244
        %v1247 = vld [vmem:[%s374] sm:$0xff]
        %v1248 = vld [vmem:[%s374 + $0x8] sm:$0xff]
        %v1249 = vld [vmem:[%s374 + $0x10] sm:$0xff]
        %v1250 = vld [vmem:[%s374 + $0x18] sm:$0xff]
        %v1251 = vld [vmem:[%s374 + $0x20] sm:$0x1]
        %v1252 = vld [vmem:[%s374 + $0x28] sm:$0x1]
        %v1259 = vrot.slane %v1247, 1
        %v1260 = vrot.slane %v1249, 1
        %v1261 = vsel %vm718, %v1259, %v1260
        %v1262 = vrot.slane %v1248, 1
        %v1263 = vrot.slane %v1250, 1
        %v1264 = vsel %vm718, %v1262, %v1263
        %v1265 = vrot.slane %v1251, 1
        %v1266 = vsel %vm718, %v1260, %v1265
        %v1267 = vrot.slane %v1252, 1
        %v1268 = vsel %vm718, %v1263, %v1267
        %1273 = vmatprep.subr.mxu0 %v547
        %1274 = vmatpush1.msra.mxu0 %v546
        %1275 = vmatprep.subr.mxu0 %v552
        %1276 = vmatpush1.msra.mxu0 %v551
        %1277 = vmatprep.subr.mxu0 %v557
        %1278 = vmatpush1.msra.mxu0 %v556
        %1279 = vmatprep.subr.mxu0 %v562
        %1280 = vmatpush1.msra.mxu0 %v561
        %1281 = vmatprep.subr.mxu0 %v567
        %1282 = vmatpush1.msra.mxu0 %v566
        %1283 = vmatprep.subr.mxu0 %v572
        %1284 = vmatpush1.msra.mxu0 %v571
        %1285 = vmatprep.subr.mxu0 %v577
        %1286 = vmatpush1.msra.mxu0 %v576
        %1287 = vmatprep.subr.mxu0 %v582
        %1288 = vmatpush1.msra.mxu0 %v581
        %1289 = vmatprep.subr.mxu0 %v587
        %1290 = vmatpush1.msra.mxu0 %v586
        %1291 = vmatprep.subr.mxu0 %v592
        %1292 = vmatpush1.msra.mxu0 %v591
        %1293 = vmatprep.subr.mxu0 %v597
        %1294 = vmatpush1.msra.mxu0 %v596
        %1295 = vmatprep.subr.mxu0 %v602
        %1296 = vmatpush1.msra.mxu0 %v601
        %1297 = vmatprep.subr.mxu0 %v607
        %1298 = vmatpush1.msra.mxu0 %v606
        %1299 = vmatprep.subr.mxu0 %v612
        %1300 = vmatpush1.msra.mxu0 %v611
        %1301 = vmatprep.subr.mxu0 %v617
        %1302 = vmatpush1.msra.mxu0 %v616
        %1303 = vmatprep.subr.mxu0 %v622
        %1304 = vmatpush1.msra.mxu0 %v621
        %1305 = vmatprep.subr.mxu0 %v627
        %1306 = vmatpush1.msra.mxu0 %v626
        %1307 = vmatprep.subr.mxu0 %v632
        %1308 = vmatpush1.msra.mxu0 %v631
        %1309 = vmatprep.subr.mxu0 %v637
        %1310 = vmatpush1.msra.mxu0 %v636
        %1311 = vmatprep.subr.mxu0 %v642
        %1312 = vmatpush1.msra.mxu0 %v641
        %1313 = vmatprep.subr.mxu0 %v647
        %1314 = vmatpush1.msra.mxu0 %v646
        %1315 = vmatprep.subr.mxu0 %v652
        %1316 = vmatpush1.msra.mxu0 %v651
        %1317 = vmatprep.subr.mxu0 %v657
        %1318 = vmatpush1.msra.mxu0 %v656
        %1319 = vmatprep.subr.mxu0 %v662
        %1320 = vmatpush1.msra.mxu0 %v661
        %1321 = vmatprep.subr.mxu0 %v667
        %1322 = vmatpush1.msra.mxu0 %v666
        %1323 = vmatprep.subr.mxu0 %v672
        %1324 = vmatpush1.msra.mxu0 %v671
        %1325 = vmatprep.subr.mxu0 %v677
        %1326 = vmatpush1.msra.mxu0 %v676
        %1327 = vmatprep.subr.mxu0 %v682
        %1328 = vmatpush1.msra.mxu0 %v681
        %1329 = vmatprep.subr.mxu0 %v687
        %1330 = vmatpush1.msra.mxu0 %v686
        %1331 = vmatprep.subr.mxu0 %v692
        %1332 = vmatpush1.msra.mxu0 %v691
        %1333 = vmatprep.subr.mxu0 %v697
        %1334 = vmatpush1.msra.mxu0 %v696
        %1335 = vmatprep.subr.mxu0 %v702
        %1336 = vmatpush1.msra.mxu0 %v701
        %1337 = vmatprep.mubr.f32.mxu0 %v1264
        %1338 = vmatmul.mubr.f32.gmra.mrb[0].mxu0 %v1261
        %v1339 = vpop.f32.mrb[0].mxu0
        %v1340 = vadd.f32 0.0, %v1339
        %v1341 = vpop.f32.mrb[0].mxu0
        %v1342 = vadd.f32 0.0, %v1341
        %1343 = vmatprep.mubr.f32.mxu0 %v1268
        %1344 = vmatmul.mubr.f32.gmra.mrb[0].mxu0 %v1266
        %v1345 = vpop.f32.mrb[0].mxu0
        %v1346 = vadd.f32 0.0, %v1345
        %v1347 = vpop.f32.mrb[0].mxu0
        %v1348 = vadd.f32 0.0, %v1347
        %1349 = vdwg.mxu0
        %1350 = vmatprep.subr.mxu0 %v549
        %1351 = vmatpush1.msra.mxu0 %v548
        %1352 = vmatprep.subr.mxu0 %v554
        %1353 = vmatpush1.msra.mxu0 %v553
        %1354 = vmatprep.subr.mxu0 %v559
        %1355 = vmatpush1.msra.mxu0 %v558
        %1356 = vmatprep.subr.mxu0 %v564
        %1357 = vmatpush1.msra.mxu0 %v563
        %1358 = vmatprep.subr.mxu0 %v569
        %1359 = vmatpush1.msra.mxu0 %v568
        %1360 = vmatprep.subr.mxu0 %v574
        %1361 = vmatpush1.msra.mxu0 %v573
        %1362 = vmatprep.subr.mxu0 %v579
        %1363 = vmatpush1.msra.mxu0 %v578
        %1364 = vmatprep.subr.mxu0 %v584
        %1365 = vmatpush1.msra.mxu0 %v583
        %1366 = vmatprep.subr.mxu0 %v589
        %1367 = vmatpush1.msra.mxu0 %v588
        %1368 = vmatprep.subr.mxu0 %v594
        %1369 = vmatpush1.msra.mxu0 %v593
        %1370 = vmatprep.subr.mxu0 %v599
        %1371 = vmatpush1.msra.mxu0 %v598
        %1372 = vmatprep.subr.mxu0 %v604
        %1373 = vmatpush1.msra.mxu0 %v603
        %1374 = vmatprep.subr.mxu0 %v609
        %1375 = vmatpush1.msra.mxu0 %v608
        %1376 = vmatprep.subr.mxu0 %v614
        %1377 = vmatpush1.msra.mxu0 %v613
        %1378 = vmatprep.subr.mxu0 %v619
        %1379 = vmatpush1.msra.mxu0 %v618
        %1380 = vmatprep.subr.mxu0 %v624
        %1381 = vmatpush1.msra.mxu0 %v623
        %1382 = vmatprep.subr.mxu0 %v629
        %1383 = vmatpush1.msra.mxu0 %v628
        %1384 = vmatprep.subr.mxu0 %v634
        %1385 = vmatpush1.msra.mxu0 %v633
        %1386 = vmatprep.subr.mxu0 %v639
        %1387 = vmatpush1.msra.mxu0 %v638
        %1388 = vmatprep.subr.mxu0 %v644
        %1389 = vmatpush1.msra.mxu0 %v643
        %1390 = vmatprep.subr.mxu0 %v649
        %1391 = vmatpush1.msra.mxu0 %v648
        %1392 = vmatprep.subr.mxu0 %v654
        %1393 = vmatpush1.msra.mxu0 %v653
        %1394 = vmatprep.subr.mxu0 %v659
        %1395 = vmatpush1.msra.mxu0 %v658
        %1396 = vmatprep.subr.mxu0 %v664
        %1397 = vmatpush1.msra.mxu0 %v663
        %1398 = vmatprep.subr.mxu0 %v669
        %1399 = vmatpush1.msra.mxu0 %v668
        %1400 = vmatprep.subr.mxu0 %v674
        %1401 = vmatpush1.msra.mxu0 %v673
        %1402 = vmatprep.subr.mxu0 %v679
        %1403 = vmatpush1.msra.mxu0 %v678
        %1404 = vmatprep.subr.mxu0 %v684
        %1405 = vmatpush1.msra.mxu0 %v683
        %1406 = vmatprep.subr.mxu0 %v689
        %1407 = vmatpush1.msra.mxu0 %v688
        %1408 = vmatprep.subr.mxu0 %v694
        %1409 = vmatpush1.msra.mxu0 %v693
        %1410 = vmatprep.subr.mxu0 %v699
        %1411 = vmatpush1.msra.mxu0 %v698
        %1412 = vmatprep.subr.mxu0 %v704
        %1413 = vmatpush1.msra.mxu0 %v703
        %1414 = vmatprep.mubr.f32.mxu0 %v1264
        %1415 = vmatmul.mubr.f32.gmra.mrb[0].mxu0 %v1261
        %v1416 = vpop.f32.mrb[0].mxu0
        %v1417 = vadd.f32 0.0, %v1416
        %v1418 = vpop.f32.mrb[0].mxu0
        %v1419 = vadd.f32 0.0, %v1418
        %1420 = vmatprep.mubr.f32.mxu0 %v1268
        %1421 = vmatmul.mubr.f32.gmra.mrb[0].mxu0 %v1266
        %v1422 = vpop.f32.mrb[0].mxu0
        %v1423 = vadd.f32 0.0, %v1422
        %v1424 = vpop.f32.mrb[0].mxu0
        %v1425 = vadd.f32 0.0, %v1424
        %1426 = vdwg.mxu0
        %1427 = vmatprep.subr.mxu0 0.0
        %1428 = vmatpush1.msra.mxu0 %v550
        %1429 = vmatprep.subr.mxu0 0.0
        %1430 = vmatpush1.msra.mxu0 %v555
        %1431 = vmatprep.subr.mxu0 0.0
        %1432 = vmatpush1.msra.mxu0 %v560
        %1433 = vmatprep.subr.mxu0 0.0
        %1434 = vmatpush1.msra.mxu0 %v565
        %1435 = vmatprep.subr.mxu0 0.0
        %1436 = vmatpush1.msra.mxu0 %v570
        %1437 = vmatprep.subr.mxu0 0.0
        %1438 = vmatpush1.msra.mxu0 %v575
        %1439 = vmatprep.subr.mxu0 0.0
        %1440 = vmatpush1.msra.mxu0 %v580
        %1441 = vmatprep.subr.mxu0 0.0
        %1442 = vmatpush1.msra.mxu0 %v585
        %1443 = vmatprep.subr.mxu0 0.0
        %1444 = vmatpush1.msra.mxu0 %v590
        %1445 = vmatprep.subr.mxu0 0.0
        %1446 = vmatpush1.msra.mxu0 %v595
        %1447 = vmatprep.subr.mxu0 0.0
        %1448 = vmatpush1.msra.mxu0 %v600
        %1449 = vmatprep.subr.mxu0 0.0
        %1450 = vmatpush1.msra.mxu0 %v605
        %1451 = vmatprep.subr.mxu0 0.0
        %1452 = vmatpush1.msra.mxu0 %v610
        %1453 = vmatprep.subr.mxu0 0.0
        %1454 = vmatpush1.msra.mxu0 %v615
        %1455 = vmatprep.subr.mxu0 0.0
        %1456 = vmatpush1.msra.mxu0 %v620
        %1457 = vmatprep.subr.mxu0 0.0
        %1458 = vmatpush1.msra.mxu0 %v625
        %1459 = vmatprep.subr.mxu0 0.0
        %1460 = vmatpush1.msra.mxu0 %v630
        %1461 = vmatprep.subr.mxu0 0.0
        %1462 = vmatpush1.msra.mxu0 %v635
        %1463 = vmatprep.subr.mxu0 0.0
        %1464 = vmatpush1.msra.mxu0 %v640
        %1465 = vmatprep.subr.mxu0 0.0
        %1466 = vmatpush1.msra.mxu0 %v645
        %1467 = vmatprep.subr.mxu0 0.0
        %1468 = vmatpush1.msra.mxu0 %v650
        %1469 = vmatprep.subr.mxu0 0.0
        %1470 = vmatpush1.msra.mxu0 %v655
        %1471 = vmatprep.subr.mxu0 0.0
        %1472 = vmatpush1.msra.mxu0 %v660
        %1473 = vmatprep.subr.mxu0 0.0
        %1474 = vmatpush1.msra.mxu0 %v665
        %1475 = vmatprep.subr.mxu0 0.0
        %1476 = vmatpush1.msra.mxu0 %v670
        %1477 = vmatprep.subr.mxu0 0.0
        %1478 = vmatpush1.msra.mxu0 %v675
        %1479 = vmatprep.subr.mxu0 0.0
        %1480 = vmatpush1.msra.mxu0 %v680
        %1481 = vmatprep.subr.mxu0 0.0
        %1482 = vmatpush1.msra.mxu0 %v685
        %1483 = vmatprep.subr.mxu0 0.0
        %1484 = vmatpush1.msra.mxu0 %v690
        %1485 = vmatprep.subr.mxu0 0.0
        %1486 = vmatpush1.msra.mxu0 %v695
        %1487 = vmatprep.subr.mxu0 0.0
        %1488 = vmatpush1.msra.mxu0 %v700
        %1489 = vmatprep.subr.mxu0 0.0
        %1490 = vmatpush1.msra.mxu0 %v705
        %1491 = vmatprep.mubr.f32.mxu0 %v1264
        %1492 = vmatmul.mubr.f32.gmra.mrb[0].mxu0 %v1261
        %v1493 = vpop.f32.mrb[0].mxu0
        %v1494 = vadd.f32 0.0, %v1493
        %v1495 = vpop.f32.mrb[0].mxu0
        %1496 = vmatprep.mubr.f32.mxu0 %v1268
        %1497 = vmatmul.mubr.f32.gmra.mrb[0].mxu0 %v1266
        %v1498 = vpop.f32.mrb[0].mxu0
        %v1499 = vadd.f32 0.0, %v1498
        %v1500 = vpop.f32.mrb[0].mxu0
        %1501 = vdwg.mxu0
        %1502 = vmatprep.subr.mxu0 %v387
        %1503 = vmatpush1.msra.mxu0 %v386
        %1504 = vmatprep.subr.mxu0 %v392
        %1505 = vmatpush1.msra.mxu0 %v391
        %1506 = vmatprep.subr.mxu0 %v397
        %1507 = vmatpush1.msra.mxu0 %v396
        %1508 = vmatprep.subr.mxu0 %v402
        %1509 = vmatpush1.msra.mxu0 %v401
        %1510 = vmatprep.subr.mxu0 %v407
        %1511 = vmatpush1.msra.mxu0 %v406
        %1512 = vmatprep.subr.mxu0 %v412
        %1513 = vmatpush1.msra.mxu0 %v411
        %1514 = vmatprep.subr.mxu0 %v417
        %1515 = vmatpush1.msra.mxu0 %v416
        %1516 = vmatprep.subr.mxu0 %v422
        %1517 = vmatpush1.msra.mxu0 %v421
        %1518 = vmatprep.subr.mxu0 %v427
        %1519 = vmatpush1.msra.mxu0 %v426
        %1520 = vmatprep.subr.mxu0 %v432
        %1521 = vmatpush1.msra.mxu0 %v431
        %1522 = vmatprep.subr.mxu0 %v437
        %1523 = vmatpush1.msra.mxu0 %v436
        %1524 = vmatprep.subr.mxu0 %v442
        %1525 = vmatpush1.msra.mxu0 %v441
        %1526 = vmatprep.subr.mxu0 %v447
        %1527 = vmatpush1.msra.mxu0 %v446
        %1528 = vmatprep.subr.mxu0 %v452
        %1529 = vmatpush1.msra.mxu0 %v451
        %1530 = vmatprep.subr.mxu0 %v457
        %1531 = vmatpush1.msra.mxu0 %v456
        %1532 = vmatprep.subr.mxu0 %v462
        %1533 = vmatpush1.msra.mxu0 %v461
        %1534 = vmatprep.subr.mxu0 %v467
        %1535 = vmatpush1.msra.mxu0 %v466
        %1536 = vmatprep.subr.mxu0 %v472
        %1537 = vmatpush1.msra.mxu0 %v471
        %1538 = vmatprep.subr.mxu0 %v477
        %1539 = vmatpush1.msra.mxu0 %v476
        %1540 = vmatprep.subr.mxu0 %v482
        %1541 = vmatpush1.msra.mxu0 %v481
        %1542 = vmatprep.subr.mxu0 %v487
        %1543 = vmatpush1.msra.mxu0 %v486
        %1544 = vmatprep.subr.mxu0 %v492
        %1545 = vmatpush1.msra.mxu0 %v491
        %1546 = vmatprep.subr.mxu0 %v497
        %1547 = vmatpush1.msra.mxu0 %v496
        %1548 = vmatprep.subr.mxu0 %v502
        %1549 = vmatpush1.msra.mxu0 %v501
        %1550 = vmatprep.subr.mxu0 %v507
        %1551 = vmatpush1.msra.mxu0 %v506
        %1552 = vmatprep.subr.mxu0 %v512
        %1553 = vmatpush1.msra.mxu0 %v511
        %1554 = vmatprep.subr.mxu0 %v517
        %1555 = vmatpush1.msra.mxu0 %v516
        %1556 = vmatprep.subr.mxu0 %v522
        %1557 = vmatpush1.msra.mxu0 %v521
        %1558 = vmatprep.subr.mxu0 %v527
        %1559 = vmatpush1.msra.mxu0 %v526
        %1560 = vmatprep.subr.mxu0 %v532
        %1561 = vmatpush1.msra.mxu0 %v531
        %1562 = vmatprep.subr.mxu0 %v537
        %1563 = vmatpush1.msra.mxu0 %v536
        %1564 = vmatprep.subr.mxu0 %v542
        %1565 = vmatpush1.msra.mxu0 %v541
        %1566 = vmatprep.mubr.f32.mxu0 %v1248
        %1567 = vmatmul.mubr.f32.gmra.mrb[0].mxu0 %v1247
        %v1568 = vpop.f32.mrb[0].mxu0
        %v1569 = vadd.f32 %v1340, %v1568
        %v1570 = vpop.f32.mrb[0].mxu0
        %v1571 = vadd.f32 %v1342, %v1570
        %1572 = vmatprep.mubr.f32.mxu0 %v1250
        %1573 = vmatmul.mubr.f32.gmra.mrb[0].mxu0 %v1249
        %v1574 = vpop.f32.mrb[0].mxu0
        %v1575 = vadd.f32 %v1346, %v1574
        %v1576 = vpop.f32.mrb[0].mxu0
        %v1577 = vadd.f32 %v1348, %v1576
        %1578 = vdwg.mxu0
        %1579 = vmatprep.subr.mxu0 %v389
        %1580 = vmatpush1.msra.mxu0 %v388
        %1581 = vmatprep.subr.mxu0 %v394
        %1582 = vmatpush1.msra.mxu0 %v393
        %1583 = vmatprep.subr.mxu0 %v399
        %1584 = vmatpush1.msra.mxu0 %v398
        %1585 = vmatprep.subr.mxu0 %v404
        %1586 = vmatpush1.msra.mxu0 %v403
        %1587 = vmatprep.subr.mxu0 %v409
        %1588 = vmatpush1.msra.mxu0 %v408
        %1589 = vmatprep.subr.mxu0 %v414
        %1590 = vmatpush1.msra.mxu0 %v413
        %1591 = vmatprep.subr.mxu0 %v419
        %1592 = vmatpush1.msra.mxu0 %v418
        %1593 = vmatprep.subr.mxu0 %v424
        %1594 = vmatpush1.msra.mxu0 %v423
        %1595 = vmatprep.subr.mxu0 %v429
        %1596 = vmatpush1.msra.mxu0 %v428
        %1597 = vmatprep.subr.mxu0 %v434
        %1598 = vmatpush1.msra.mxu0 %v433
        %1599 = vmatprep.subr.mxu0 %v439
        %1600 = vmatpush1.msra.mxu0 %v438
        %1601 = vmatprep.subr.mxu0 %v444
        %1602 = vmatpush1.msra.mxu0 %v443
        %1603 = vmatprep.subr.mxu0 %v449
        %1604 = vmatpush1.msra.mxu0 %v448
        %1605 = vmatprep.subr.mxu0 %v454
        %1606 = vmatpush1.msra.mxu0 %v453
        %1607 = vmatprep.subr.mxu0 %v459
        %1608 = vmatpush1.msra.mxu0 %v458
        %1609 = vmatprep.subr.mxu0 %v464
        %1610 = vmatpush1.msra.mxu0 %v463
        %1611 = vmatprep.subr.mxu0 %v469
        %1612 = vmatpush1.msra.mxu0 %v468
        %1613 = vmatprep.subr.mxu0 %v474
        %1614 = vmatpush1.msra.mxu0 %v473
        %1615 = vmatprep.subr.mxu0 %v479
        %1616 = vmatpush1.msra.mxu0 %v478
        %1617 = vmatprep.subr.mxu0 %v484
        %1618 = vmatpush1.msra.mxu0 %v483
        %1619 = vmatprep.subr.mxu0 %v489
        %1620 = vmatpush1.msra.mxu0 %v488
        %1621 = vmatprep.subr.mxu0 %v494
        %1622 = vmatpush1.msra.mxu0 %v493
        %1623 = vmatprep.subr.mxu0 %v499
        %1624 = vmatpush1.msra.mxu0 %v498
        %1625 = vmatprep.subr.mxu0 %v504
        %1626 = vmatpush1.msra.mxu0 %v503
        %1627 = vmatprep.subr.mxu0 %v509
        %1628 = vmatpush1.msra.mxu0 %v508
        %1629 = vmatprep.subr.mxu0 %v514
        %1630 = vmatpush1.msra.mxu0 %v513
        %1631 = vmatprep.subr.mxu0 %v519
        %1632 = vmatpush1.msra.mxu0 %v518
        %1633 = vmatprep.subr.mxu0 %v524
        %1634 = vmatpush1.msra.mxu0 %v523
        %1635 = vmatprep.subr.mxu0 %v529
        %1636 = vmatpush1.msra.mxu0 %v528
        %1637 = vmatprep.subr.mxu0 %v534
        %1638 = vmatpush1.msra.mxu0 %v533
        %1639 = vmatprep.subr.mxu0 %v539
        %1640 = vmatpush1.msra.mxu0 %v538
        %1641 = vmatprep.subr.mxu0 %v544
        %1642 = vmatpush1.msra.mxu0 %v543
        %1643 = vmatprep.mubr.f32.mxu0 %v1248
        %1644 = vmatmul.mubr.f32.gmra.mrb[0].mxu0 %v1247
        %v1645 = vpop.f32.mrb[0].mxu0
        %v1646 = vadd.f32 %v1417, %v1645
        %v1647 = vpop.f32.mrb[0].mxu0
        %v1648 = vadd.f32 %v1419, %v1647
        %1649 = vmatprep.mubr.f32.mxu0 %v1250
        %1650 = vmatmul.mubr.f32.gmra.mrb[0].mxu0 %v1249
        %v1651 = vpop.f32.mrb[0].mxu0
        %v1652 = vadd.f32 %v1423, %v1651
        %v1653 = vpop.f32.mrb[0].mxu0
        %v1654 = vadd.f32 %v1425, %v1653
        %1655 = vdwg.mxu0
        %1656 = vmatprep.subr.mxu0 0.0
        %1657 = vmatpush1.msra.mxu0 %v390
        %1658 = vmatprep.subr.mxu0 0.0
        %1659 = vmatpush1.msra.mxu0 %v395
        %1660 = vmatprep.subr.mxu0 0.0
        %1661 = vmatpush1.msra.mxu0 %v400
        %1662 = vmatprep.subr.mxu0 0.0
        %1663 = vmatpush1.msra.mxu0 %v405
        %1664 = vmatprep.subr.mxu0 0.0
        %1665 = vmatpush1.msra.mxu0 %v410
        %1666 = vmatprep.subr.mxu0 0.0
        %1667 = vmatpush1.msra.mxu0 %v415
        %1668 = vmatprep.subr.mxu0 0.0
        %1669 = vmatpush1.msra.mxu0 %v420
        %1670 = vmatprep.subr.mxu0 0.0
        %1671 = vmatpush1.msra.mxu0 %v425
        %1672 = vmatprep.subr.mxu0 0.0
        %1673 = vmatpush1.msra.mxu0 %v430
        %1674 = vmatprep.subr.mxu0 0.0
        %1675 = vmatpush1.msra.mxu0 %v435
        %1676 = vmatprep.subr.mxu0 0.0
        %1677 = vmatpush1.msra.mxu0 %v440
        %1678 = vmatprep.subr.mxu0 0.0
        %1679 = vmatpush1.msra.mxu0 %v445
        %1680 = vmatprep.subr.mxu0 0.0
        %1681 = vmatpush1.msra.mxu0 %v450
        %1682 = vmatprep.subr.mxu0 0.0
        %1683 = vmatpush1.msra.mxu0 %v455
        %1684 = vmatprep.subr.mxu0 0.0
        %1685 = vmatpush1.msra.mxu0 %v460
        %1686 = vmatprep.subr.mxu0 0.0
        %1687 = vmatpush1.msra.mxu0 %v465
        %1688 = vmatprep.subr.mxu0 0.0
        %1689 = vmatpush1.msra.mxu0 %v470
        %1690 = vmatprep.subr.mxu0 0.0
        %1691 = vmatpush1.msra.mxu0 %v475
        %1692 = vmatprep.subr.mxu0 0.0
        %1693 = vmatpush1.msra.mxu0 %v480
        %1694 = vmatprep.subr.mxu0 0.0
        %1695 = vmatpush1.msra.mxu0 %v485
        %1696 = vmatprep.subr.mxu0 0.0
        %1697 = vmatpush1.msra.mxu0 %v490
        %1698 = vmatprep.subr.mxu0 0.0
        %1699 = vmatpush1.msra.mxu0 %v495
        %1700 = vmatprep.subr.mxu0 0.0
        %1701 = vmatpush1.msra.mxu0 %v500
        %1702 = vmatprep.subr.mxu0 0.0
        %1703 = vmatpush1.msra.mxu0 %v505
        %1704 = vmatprep.subr.mxu0 0.0
        %1705 = vmatpush1.msra.mxu0 %v510
        %1706 = vmatprep.subr.mxu0 0.0
        %1707 = vmatpush1.msra.mxu0 %v515
        %1708 = vmatprep.subr.mxu0 0.0
        %1709 = vmatpush1.msra.mxu0 %v520
        %1710 = vmatprep.subr.mxu0 0.0
        %1711 = vmatpush1.msra.mxu0 %v525
        %1712 = vmatprep.subr.mxu0 0.0
        %1713 = vmatpush1.msra.mxu0 %v530
        %1714 = vmatprep.subr.mxu0 0.0
        %1715 = vmatpush1.msra.mxu0 %v535
        %1716 = vmatprep.subr.mxu0 0.0
        %1717 = vmatpush1.msra.mxu0 %v540
        %1718 = vmatprep.subr.mxu0 0.0
        %1719 = vmatpush1.msra.mxu0 %v545
        %1720 = vmatprep.mubr.f32.mxu0 %v1248
        %1721 = vmatmul.mubr.f32.gmra.mrb[0].mxu0 %v1247
        %v1722 = vpop.f32.mrb[0].mxu0
        %v1723 = vadd.f32 %v1494, %v1722
        %v1724 = vpop.f32.mrb[0].mxu0
        %1725 = vmatprep.mubr.f32.mxu0 %v1250
        %1726 = vmatmul.mubr.f32.gmra.mrb[0].mxu0 %v1249
        %v1727 = vpop.f32.mrb[0].mxu0
        %v1728 = vadd.f32 %v1499, %v1727
        %v1729 = vpop.f32.mrb[0].mxu0
        %1730 = vdwg.mxu0
        %v1731 = vmul.f32 %v1569, %v1569
        %v1732 = vmul.f32 %v1571, %v1571
        %v1733 = vmul.f32 %v1575, %v1575
        %v1734 = vmul.f32 %v1577, %v1577
        %v1735 = vmul.f32 %v1646, %v1646
        %v1736 = vmul.f32 %v1648, %v1648
        %v1737 = vmul.f32 %v1652, %v1652
        %v1738 = vmul.f32 %v1654, %v1654
        %v1739 = vadd.f32 %v1731, %v1735
        %v1740 = vadd.f32 %v1732, %v1736
        %v1741 = vadd.f32 %v1733, %v1737
        %v1742 = vadd.f32 %v1734, %v1738
        %v1743 = vmax.f32 %v1739, 1e-10
        %v1744 = vmax.f32 %v1740, 1e-10
        %v1745 = vmax.f32 %v1741, 1e-10
        %v1746 = vmax.f32 %v1742, 1e-10
        %v1747 = vlog2.pop %v1743
        %v1748 = vmul.f32 %v1747, 0.6931472
        %v1749 = vlog2.pop %v1744
        %v1750 = vmul.f32 %v1749, 0.6931472
        %v1751 = vlog2.pop %v1745
        %v1752 = vmul.f32 %v1751, 0.6931472
        %v1753 = vlog2.pop %v1746
        %v1754 = vmul.f32 %v1753, 0.6931472
        %v1755 = vmul.f32 %v1748, %v1218
        %v1756 = vmul.f32 %v1750, %v1218
        %v1757 = vmul.f32 %v1752, %v1223
        %v1758 = vmul.f32 %v1754, %v1223
        %v1759 = vmul.f32 %v1723, %v1723
        %v1760 = vmul.f32 %v1728, %v1728
        %v1761 = vmax.f32 %v1759, 1e-10
        %v1762 = vmax.f32 %v1760, 1e-10
        %v1763 = vlog2.pop %v1761
        %v1764 = vmul.f32 %v1763, 0.6931472
        %v1765 = vlog2.pop %v1762
        %v1766 = vmul.f32 %v1765, 0.6931472
        %v1767 = vmul.f32 %v1764, %v1243
        %v1768 = vmul.f32 %v1766, %v1244
        %v1769 = vld [vmem:[#allocation2] sm:$0x1]
        %v1770 = vmul.f32 %v1225, %v1225
        %v1771 = vmul.f32 %v1226, %v1226
        %v1772 = vmul.f32 %v1227, %v1227
        %v1773 = vmul.f32 %v1228, %v1228
        %v1774 = vmul.f32 %v1245, %v1245
        %v1775 = vmul.f32 %v1246, %v1246
        %v1776 = vadd.f32 %v1770, %v1771
        %v1777 = vadd.f32 %v1776, %v1772
        %v1778 = vadd.f32 %v1777, %v1773
        %1779 = vadd.xlane.f32.xlu0 %v1778
        %v1780 = vpop.xlane.xlu0 %1779
        %v1781 = vrot.slane %v1780, 4
        %v1782 = vadd.f32 %v1780, %v1781
        %v1783 = vrot.slane %v1782, 2
        %v1784 = vadd.f32 %v1782, %v1783
        %v1785 = vrot.slane %v1784, 1
        %v1786 = vadd.f32 %v1784, %v1785
        %v1787 = vadd.f32 %v1774, %v1775
        %1788 = vadd.xlane.f32.xlu0 %v1787
        %v1789 = vpop.xlane.xlu0 %1788
        %v1790 = vrot.slane %v1789, 4
        %v1791 = vadd.f32 %v1789, %v1790
        %v1792 = vrot.slane %v1791, 2
        %v1793 = vadd.f32 %v1791, %v1792
        %v1794 = vrot.slane %v1793, 1
        %v1795 = vadd.f32 %v1793, %v1794
        %v1796 = vadd.f32 %v1786, %v1795
        %v1797 = vadd.f32 %v1769, %v1796
        %vm1798 = vcmask 0
        %1799 = vst.msk [vmem:[#allocation2] sm:$0x1] %vm1798, %v1797
        %v1800 = vld [vmem:[#allocation3] sm:$0x1]
        %v1801 = vmul.f32 %v1225, %v1755
        %v1802 = vmul.f32 %v1226, %v1756
        %v1803 = vmul.f32 %v1227, %v1757
        %v1804 = vmul.f32 %v1228, %v1758
        %v1805 = vmul.f32 %v1245, %v1767
        %v1806 = vmul.f32 %v1246, %v1768
        %v1807 = vadd.f32 %v1801, %v1802
        %v1808 = vadd.f32 %v1807, %v1803
        %v1809 = vadd.f32 %v1808, %v1804
        %1810 = vadd.xlane.f32.xlu0 %v1809
        %v1811 = vpop.xlane.xlu0 %1810
        %v1812 = vrot.slane %v1811, 4
        %v1813 = vadd.f32 %v1811, %v1812
        %v1814 = vrot.slane %v1813, 2
        %v1815 = vadd.f32 %v1813, %v1814
        %v1816 = vrot.slane %v1815, 1
        %v1817 = vadd.f32 %v1815, %v1816
        %v1818 = vadd.f32 %v1805, %v1806
        %1819 = vadd.xlane.f32.xlu0 %v1818
        %v1820 = vpop.xlane.xlu0 %1819
        %v1821 = vrot.slane %v1820, 4
        %v1822 = vadd.f32 %v1820, %v1821
        %v1823 = vrot.slane %v1822, 2
        %v1824 = vadd.f32 %v1822, %v1823
        %v1825 = vrot.slane %v1824, 1
        %v1826 = vadd.f32 %v1824, %v1825
        %v1827 = vadd.f32 %v1817, %v1826
        %v1828 = vadd.f32 %v1800, %v1827
        %1829 = vst.msk [vmem:[#allocation3] sm:$0x1] %vm1798, %v1828
        %v1830 = vld [vmem:[#allocation4] sm:$0x1]
        %v1831 = vmul.f32 %v1755, %v1755
        %v1832 = vmul.f32 %v1756, %v1756
        %v1833 = vmul.f32 %v1757, %v1757
        %v1834 = vmul.f32 %v1758, %v1758
        %v1835 = vmul.f32 %v1767, %v1767
        %v1836 = vmul.f32 %v1768, %v1768
        %v1837 = vadd.f32 %v1831, %v1832
        %v1838 = vadd.f32 %v1837, %v1833
        %v1839 = vadd.f32 %v1838, %v1834
        %1840 = vadd.xlane.f32.xlu0 %v1839
        %v1841 = vpop.xlane.xlu0 %1840
        %v1842 = vrot.slane %v1841, 4
        %v1843 = vadd.f32 %v1841, %v1842
        %v1844 = vrot.slane %v1843, 2
        %v1845 = vadd.f32 %v1843, %v1844
        %v1846 = vrot.slane %v1845, 1
        %v1847 = vadd.f32 %v1845, %v1846
        %v1848 = vadd.f32 %v1835, %v1836
        %1849 = vadd.xlane.f32.xlu0 %v1848
        %v1850 = vpop.xlane.xlu0 %1849
        %v1851 = vrot.slane %v1850, 4
        %v1852 = vadd.f32 %v1850, %v1851
        %v1853 = vrot.slane %v1852, 2
        %v1854 = vadd.f32 %v1852, %v1853
        %v1855 = vrot.slane %v1854, 1
        %v1856 = vadd.f32 %v1854, %v1855
        %v1857 = vadd.f32 %v1847, %v1856
        %v1858 = vadd.f32 %v1830, %v1857
        %1859 = vst.msk [vmem:[#allocation4] sm:$0x1] %vm1798, %v1858
        // Predicated region
        $region57: #{tpu_custom_call.1} parent=43 // pred_check
          %p1860 = pneg %p375
        $region58: #{tpu_custom_call.1} parent=43 // pred_check_branch
          %1862 = sbr.rel (%p1860) target = $region60
        $region59: #{tpu_custom_call.1} parent=43 // pred_region
          %v1863 = vld [vmem:[#allocation2] sm:$0x1]
          %v1864 = vld [vmem:[#allocation3] sm:$0x1]
          %v1865 = vld [vmem:[#allocation4] sm:$0x1]
          %v1866 = vmul.f32 %v1864, %v1864
          %v1867 = vrcp.pop %v1863
          %v1868 = vmul.f32 %v1866, %v1867
          %v1869 = vsub.f32 %v1865, %v1868
          %v1870 = vmax.f32 %v1869, 0.0
          %v1871 = vmul.f32 %v1870, 18.86117
          %vm1872 = vcmp.gt.f32.partialorder %v1863, 0.0
          %v1873 = vsel %vm1872, %v1871, 0.0
          %1875 = vset.pattern.permute.xlu0 0
          %1876 = vperm.xlu0 %1875, %v1873
          %v1877 = vpop.permute.xlu0 %1876
          %v1879 = vlaneseq
          %v1880 = vshrl.u32 %v1879, 7
          %v1881 = vsub.s32 0, %v1880
          %v1882 = vrot.slane %v1877, %v1881
          %1883 = vst [vmem:[%s346] sm:$0x1] %v1882
        $region60: #{tpu_custom_call.1} parent=43 // pred_fallthru
          _
        %s1884 = sand.u32 %s189, 1
        %s1885 = scalar_lea.sflag [#allocation7], %s1884
        %s1886 = sand.u32 %s189, 1
        %s1887 = scalar_lea.vmem [#allocation10], %s1886
        // Predicated region
        $region61: #{tpu_custom_call.1} parent=43 // pred_check
          %p1888 = pneg %p199
        $region62: #{tpu_custom_call.1} parent=43 // pred_check_branch
          %1890 = sbr.rel (%p1888) target = $region64
        $region63: #{tpu_custom_call.1} parent=43 // pred_region
          %s1892 = ssub.s32 16, 16
          %1893 = vsyncadd %s1885, %s1892
          %s1894 = smul.addr %s26, 16
          %s1895 = scalar_lea.hbm %s6, %s1894
          %s1897 = sshll.u32 %s1887, 4
          %s1898 = int_to_ptr.vmem [resolvable:$true] %s1897
          %1900 = dma.vmem_to_hbm [thread:$0]  %s1898, 16, %s1895, %s1885
        $region64: #{tpu_custom_call.1} parent=43 // pred_fallthru
          _
      $region44: #{tpu_custom_call.1} parent=5 // pred_fallthru
        _
      %p1901 = scmp.le.s32.totalorder 2, %s17
      // Predicated region
      $region65: #{tpu_custom_call.1} parent=5 // pred_check
        %p1902 = pneg %p1901
      $region66: #{tpu_custom_call.1} parent=5 // pred_check_branch
        %1904 = sbr.rel (%p1902) target = $region68
      $region67: #{tpu_custom_call.1} parent=5 // pred_region
        %s1905 = ssub.s32 %s17, 2
        // Predicated region
        $region69: #{tpu_custom_call.1} parent=67 // pred_check
          %p1906 = pneg %p205
        $region70: #{tpu_custom_call.1} parent=67 // pred_check_branch
          %1908 = sbr.rel (%p1906) target = $region72
        $region71: #{tpu_custom_call.1} parent=67 // pred_region
          %s1909 = sand.u32 %s190, 1
          %s1910 = scalar_lea.sflag [#allocation7], %s1909
          %s1911 = sand.u32 %s190, 1
          %s1912 = scalar_lea.vmem [#allocation10], %s1911
          %1913 = dma.done %s1910, 16
        $region72: #{tpu_custom_call.1} parent=67 // pred_fallthru
          _
      $region68: #{tpu_custom_call.1} parent=5 // pred_fallthru
        _
    $region6: #{tpu_custom_call.1} parent=1 // loop_footer
      %s21 = sadd.s32 1, %s17
    $region7: #{tpu_custom_call.1} parent=1 // loop_footer_branch
      %16 = sbr.rel target = $region3
    $region8: #{tpu_custom_call.1} parent=1 // loop_exit
      _
    %1914 = vsyncpa [#allocation6], 1
    %s1915 = scalar_lea.sflag [#allocation6], 1
    %1916 = vsyncpa %s1915, 1
    %1917 = vsyncpa [#allocation9], 1
    %1918 = vsyncpa [#allocation7], 1
    %s1919 = scalar_lea.sflag [#allocation7], 1
    %1920 = vsyncpa %s1919, 1

</llo_original>
